<compile_context>
chip_gen: v6e
topology: v6e:2x2x1
jax: 0.10.0
libtpu: 0.0.40
codegen_flags: <defaults>
</compile_context>

<pallas_src>
import functools

import jax
import jax.numpy as jnp
from jax.experimental import pallas as pl
from jax.experimental.pallas import tpu as pltpu

_HIDDEN = (512, 256, 128, 256)   # fc1..fc4 output widths (fixed by the module)
_TB_CAP = 512                    # max batch-tile rows per grid step


def _round_up(x, m):
    return (x + m - 1) // m * m


@functools.lru_cache(maxsize=None)
def _tensorcores_per_chip():
    """v7x has 2 TensorCores per chip; v5e/v6e have 1 (best-effort detection)."""
    try:
        kind = jax.devices()[0].device_kind.lower()
    except Exception:
        return 1
    return 2 if "v7" in kind else 1


def _mlp_kernel(d_items, d_user, xi_ref, xu_ref,
                w1_ref, b1_ref, w2_ref, b2_ref, w3_ref, b3_ref,
                w4_ref, b4_ref, w5_ref, b5_ref, o_ref, x1_ref):
    """Fused Generator forward: assemble fc1 input, 4x(Linear+ReLU), Linear+Tanh."""
    tb = x1_ref.shape[0]
    d1 = d_items + d_user
    d1_pad = x1_ref.shape[1]

    # Assemble [items | user | zeros] in VMEM as bf16 -> one K-aligned fc1 dot.
    x1_ref[:, :d_items] = xi_ref[...].astype(jnp.bfloat16)
    x1_ref[:, d_items:d1] = xu_ref[...].astype(jnp.bfloat16)
    if d1_pad > d1:
        # Re-zero every step: cheap, and safe under megacore grid partitioning.
        x1_ref[:, d1:] = jnp.zeros((tb, d1_pad - d1), jnp.bfloat16)

    # fc1 (+ bias, ReLU); accumulation and bias add stay f32.
    h = jnp.dot(x1_ref[...], w1_ref[...],
                preferred_element_type=jnp.float32) + b1_ref[...]
    h = jnp.maximum(h, 0.0).astype(jnp.bfloat16)   # bf16 inter-layer activations

    # fc2..fc4 (+ bias, ReLU)
    for w_ref, b_ref in ((w2_ref, b2_ref), (w3_ref, b3_ref), (w4_ref, b4_ref)):
        h = jnp.dot(h, w_ref[...], preferred_element_type=jnp.float32) + b_ref[...]
        h = jnp.maximum(h, 0.0).astype(jnp.bfloat16)

    # fc5 (+ bias, Tanh); f32 output like the torch module.
    h = jnp.dot(h, w5_ref[...], preferred_element_type=jnp.float32) + b5_ref[...]
    o_ref[...] = jnp.tanh(h).astype(o_ref.dtype)


def prepare_generator_params(params, num_items, item_dim):
    """One-time weight prep (call once, outside the hot path).

    * fc1 weight is copied into a zero-padded, lane-aligned
      (round_up(d_in, 128), 512) bf16 block; row order [items | user] matches
      the torch concat, so no reordering is needed.
    * fc2..fc4 weights are cast to bf16 once.
    * fc5 weight/bias columns are zero-padded to a multiple of 128 lanes so
      output stores are unmasked.
    * Biases stay f32 (the kernel adds them in f32).
    """
    d_items = num_items * item_dim
    d_user = item_dim
    d1 = d_items + d_user
    d1_pad = _round_up(d1, 128)
    d_out = num_items * item_dim
    d_out_pad = _round_up(d_out, 128)

    (w1, b1), (w2, b2), (w3, b3), (w4, b4), (w5, b5) = params

    w1m = jnp.zeros((d1_pad, w1.shape[1]), jnp.bfloat16)
    w1m = w1m.at[:d1, :].set(w1.astype(jnp.bfloat16))

    w5p = jnp.zeros((w5.shape[0], d_out_pad), jnp.bfloat16)
    w5p = w5p.at[:, :d_out].set(w5.astype(jnp.bfloat16))
    b5p = jnp.zeros((1, d_out_pad), jnp.float32)
    b5p = b5p.at[:, :d_out].set(b5.reshape(1, -1).astype(jnp.float32))

    as_bias = lambda b: b.reshape(1, -1).astype(jnp.float32)
    return (w1m, as_bias(b1),
            w2.astype(jnp.bfloat16), as_bias(b2),
            w3.astype(jnp.bfloat16), as_bias(b3),
            w4.astype(jnp.bfloat16), as_bias(b4),
            w5p, b5p)


@functools.partial(jax.jit, static_argnames=("num_items", "item_dim"))
def generator_forward(other_domain_items, user_emb, prepared, *, num_items, item_dim):
    """JAX wrapper reproducing Generator.forward (torch semantics, f32 output)."""
    d_items = num_items * item_dim
    d_user = item_dim
    d_out = num_items * item_dim

    (w1m, b1, w2, b2, w3, b3, w4, b4, w5p, b5p) = prepared
    d1_pad = w1m.shape[0]
    d_out_pad = w5p.shape[1]

    # Reshape only; keep the native input dtype (kernel casts to bf16 itself).
    x_items = other_domain_items.reshape(-1, d_items)
    x_user = user_emb.reshape(-1, d_user)
    batch = x_items.shape[0]

    # --- batch tiling: big tiles, minimal padding (<= a few rows per step). ---
    b8 = _round_up(batch, 8)
    nsteps = pl.cdiv(b8, _TB_CAP)
    tcs = _tensorcores_per_chip()
    if tcs > 1 and nsteps < tcs and batch >= 16 * tcs:
        nsteps = tcs                      # give both v7x TensorCores a grid step
    tb = _round_up(pl.cdiv(b8, nsteps), 8)
    b_pad = nsteps * tb
    if b_pad != batch:
        pad = ((0, b_pad - batch), (0, 0))
        x_items = jnp.pad(x_items, pad)
        x_user = jnp.pad(x_user, pad)

    act_map = lambda i: (i, 0)
    const_map = lambda i: (0, 0)
    full = lambda a: pl.BlockSpec(a.shape, const_map)

    mm = (d1_pad * _HIDDEN[0] + _HIDDEN[0] * _HIDDEN[1]
          + _HIDDEN[1] * _HIDDEN[2] + _HIDDEN[2] * _HIDDEN[3]
          + _HIDDEN[3] * d_out_pad)
    cost = pl.CostEstimate(
        flops=2 * b_pad * mm,
        transcendentals=b_pad * d_out_pad,
        bytes_accessed=(b_pad * d_items * x_items.dtype.itemsize
                        + b_pad * d_user * x_user.dtype.itemsize
                        + b_pad * d_out_pad * 4          # f32 output
                        + 2 * mm                          # bf16 weights
                        + 4 * (sum(_HIDDEN) + d_out_pad)))  # f32 biases

    out = pl.pallas_call(
        functools.partial(_mlp_kernel, d_items, d_user),
        out_shape=jax.ShapeDtypeStruct((b_pad, d_out_pad), jnp.float32),
        grid_spec=pltpu.PrefetchScalarGridSpec(
            num_scalar_prefetch=0,
            grid=(b_pad // tb,),
            in_specs=[
                pl.BlockSpec((tb, d_items), act_map),
                pl.BlockSpec((tb, d_user), act_map),
                full(w1m), full(b1),
                full(w2), full(b2),
                full(w3), full(b3),
                full(w4), full(b4),
                full(w5p), full(b5p),
            ],
            out_specs=pl.BlockSpec((tb, d_out_pad), act_map),
            scratch_shapes=[pltpu.VMEM((tb, d1_pad), jnp.bfloat16)],
        ),
        compiler_params=pltpu.CompilerParams(
            dimension_semantics=("parallel",)),
        cost_estimate=cost,
    )(x_items, x_user, w1m, b1, w2, b2, w3, b3, w4, b4, w5p, b5p)

    return out[:batch, :d_out]


def init_generator_params(key, num_items, item_dim):
    """nn.Linear-style init (uniform +-1/sqrt(fan_in)); weights (in, out), biases (1, out)."""
    dims = [(num_items + 1) * item_dim, *_HIDDEN, num_items * item_dim]
    params = []
    for i in range(5):
        fan_in, fan_out = dims[i], dims[i + 1]
        key, kw, kb = jax.random.split(key, 3)
        bound = 1.0 / jnp.sqrt(fan_in)
        w = jax.random.uniform(kw, (fan_in, fan_out), jnp.float32, -bound, bound)
        b = jax.random.uniform(kb, (1, fan_out), jnp.float32, -bound, bound)
        params.append((w, b))
    return tuple(params)


def _reference_forward(other_domain_items, user_emb, params, num_items, item_dim):
    x_items = other_domain_items.reshape(-1, num_items * item_dim)
    x_user = user_emb.reshape(-1, item_dim)
    h = jnp.concatenate([x_items, x_user], axis=1)
    for i, (w, b) in enumerate(params):
        h = h @ w + b
        if i < 4:
            h = jnp.maximum(h, 0.0)
    return jnp.tanh(h)


if __name__ == "__main__":
    num_items = 8
    item_dim = 16
    batch = 2

    key = jax.random.PRNGKey(0)
    k_params, k_items, k_user = jax.random.split(key, 3)

    params = init_generator_params(k_params, num_items, item_dim)
    prepared = prepare_generator_params(params, num_items, item_dim)  # one-time prep

    other_domain_items = jax.random.normal(k_items, (batch, num_items, item_dim), jnp.float32)
    user_emb = jax.random.normal(k_user, (batch, item_dim), jnp.float32)

    out = generator_forward(other_domain_items, user_emb, prepared,
                            num_items=num_items, item_dim=item_dim)
    out = jax.block_until_ready(out)

    ref = _reference_forward(other_domain_items, user_emb, params, num_items, item_dim)
    assert out.shape == (batch, num_items * item_dim), out.shape
    # bf16 MXU operands / bf16 inter-layer activations with f32 accumulation
    # -> relaxed tolerance vs the f32 reference.
    assert jnp.allclose(out, ref, atol=2e-2, rtol=2e-2), float(jnp.max(jnp.abs(out - ref)))

    print("KERNEL_OK")
</pallas_src>

<mosaic_0001>
module attributes {stable_mosaic.version = 11 : i64} {
  func.func @_mlp_kernel(%arg0: i32, %arg1: memref<8x128xf32, #tpu.memory_space<vmem>>, %arg2: memref<8x16xf32, #tpu.memory_space<vmem>>, %arg3: memref<256x512xbf16, #tpu.memory_space<vmem>>, %arg4: memref<1x512xf32, #tpu.memory_space<vmem>>, %arg5: memref<512x256xbf16, #tpu.memory_space<vmem>>, %arg6: memref<1x256xf32, #tpu.memory_space<vmem>>, %arg7: memref<256x128xbf16, #tpu.memory_space<vmem>>, %arg8: memref<1x128xf32, #tpu.memory_space<vmem>>, %arg9: memref<128x256xbf16, #tpu.memory_space<vmem>>, %arg10: memref<1x256xf32, #tpu.memory_space<vmem>>, %arg11: memref<256x128xbf16, #tpu.memory_space<vmem>>, %arg12: memref<1x128xf32, #tpu.memory_space<vmem>>, %arg13: memref<8x128xf32, #tpu.memory_space<vmem>>, %arg14: memref<8x256xbf16, #tpu.memory_space<vmem>>) attributes {dimension_semantics = [#tpu.dimension_semantics<parallel>], iteration_bounds = array<i64: 1>, scalar_prefetch = 0 : i64, scratch_operands = 1 : i64, tpu.core_type = #tpu.core_type<tc>, window_params = [{transform_indices = @transform_0, window_bounds = array<i64: 8, 128>}, {transform_indices = @transform_1, window_bounds = array<i64: 8, 16>}, {pipeline_mode = #tpu.pipeline_mode<synchronous>, transform_indices = @transform_2, window_bounds = array<i64: 256, 512>}, {pipeline_mode = #tpu.pipeline_mode<synchronous>, transform_indices = @transform_3, window_bounds = array<i64: 1, 512>}, {pipeline_mode = #tpu.pipeline_mode<synchronous>, transform_indices = @transform_4, window_bounds = array<i64: 512, 256>}, {pipeline_mode = #tpu.pipeline_mode<synchronous>, transform_indices = @transform_5, window_bounds = array<i64: 1, 256>}, {pipeline_mode = #tpu.pipeline_mode<synchronous>, transform_indices = @transform_6, window_bounds = array<i64: 256, 128>}, {pipeline_mode = #tpu.pipeline_mode<synchronous>, transform_indices = @transform_7, window_bounds = array<i64: 1, 128>}, {pipeline_mode = #tpu.pipeline_mode<synchronous>, transform_indices = @transform_8, window_bounds = array<i64: 128, 256>}, {pipeline_mode = #tpu.pipeline_mode<synchronous>, transform_indices = @transform_9, window_bounds = array<i64: 1, 256>}, {pipeline_mode = #tpu.pipeline_mode<synchronous>, transform_indices = @transform_10, window_bounds = array<i64: 256, 128>}, {pipeline_mode = #tpu.pipeline_mode<synchronous>, transform_indices = @transform_11, window_bounds = array<i64: 1, 128>}, {transform_indices = @transform_12, window_bounds = array<i64: 8, 128>}]} {
    %c0 = arith.constant 0 : index
    %c0_0 = arith.constant 0 : index
    %0 = vector.load %arg1[%c0, %c0_0] : memref<8x128xf32, #tpu.memory_space<vmem>>, vector<8x128xf32>
    %1 = arith.truncf %0 : vector<8x128xf32> to vector<8x128xbf16>
    %c0_1 = arith.constant 0 : index
    %c0_2 = arith.constant 0 : index
    %2 = vector.load %arg14[%c0_1, %c0_2] : memref<8x256xbf16, #tpu.memory_space<vmem>>, vector<8x128xbf16>
    tpu.vector_store %arg14[%c0_1, %c0_2], %1 {strides = array<i32>} : memref<8x256xbf16, #tpu.memory_space<vmem>>, vector<8x128xbf16>,
    %c0_3 = arith.constant 0 : index
    %c0_4 = arith.constant 0 : index
    %3 = vector.load %arg2[%c0_3, %c0_4] : memref<8x16xf32, #tpu.memory_space<vmem>>, vector<8x16xf32>
    %4 = arith.truncf %3 : vector<8x16xf32> to vector<8x16xbf16>
    %c0_5 = arith.constant 0 : index
    %c128 = arith.constant 128 : index
    %5 = vector.load %arg14[%c0_5, %c128] : memref<8x256xbf16, #tpu.memory_space<vmem>>, vector<8x16xbf16>
    tpu.vector_store %arg14[%c0_5, %c128], %4 {strides = array<i32>} : memref<8x256xbf16, #tpu.memory_space<vmem>>, vector<8x16xbf16>,
    %cst = arith.constant 0.000000e+00 : bf16
    %6 = vector.broadcast %cst : bf16 to vector<8x112xbf16>
    %c0_6 = arith.constant 0 : index
    %c144 = arith.constant 144 : index
    %7 = vector.load %arg14[%c0_6, %c144] : memref<8x256xbf16, #tpu.memory_space<vmem>>, vector<8x112xbf16>
    tpu.vector_store %arg14[%c0_6, %c144], %6 {strides = array<i32>} : memref<8x256xbf16, #tpu.memory_space<vmem>>, vector<8x112xbf16>,
    %c0_7 = arith.constant 0 : index
    %c0_8 = arith.constant 0 : index
    %8 = vector.load %arg14[%c0_7, %c0_8] : memref<8x256xbf16, #tpu.memory_space<vmem>>, vector<8x256xbf16>
    %c0_9 = arith.constant 0 : index
    %c0_10 = arith.constant 0 : index
    %9 = vector.load %arg3[%c0_9, %c0_10] : memref<256x512xbf16, #tpu.memory_space<vmem>>, vector<256x512xbf16>
    %cst_11 = arith.constant dense<0.000000e+00> : vector<8x512xf32>
    %10 = tpu.matmul %8, %9, %cst_11 {dimension_numbers = #tpu.dot_dimension_numbers<[1], [0], [0], [1], [0, 0, 1, 1], [], []>} : vector<8x256xbf16>, vector<256x512xbf16>, vector<8x512xf32> -> vector<8x512xf32>
    %c0_12 = arith.constant 0 : index
    %c0_13 = arith.constant 0 : index
    %11 = vector.load %arg4[%c0_12, %c0_13] : memref<1x512xf32, #tpu.memory_space<vmem>>, vector<1x512xf32>
    %12 = vector.broadcast %11 : vector<1x512xf32> to vector<8x512xf32>
    %13 = arith.addf %10, %12 : vector<8x512xf32>
    %cst_14 = arith.constant 0.000000e+00 : f32
    %14 = vector.broadcast %cst_14 : f32 to vector<8x512xf32>
    %15 = arith.maximumf %13, %14 : vector<8x512xf32>
    %16 = arith.truncf %15 : vector<8x512xf32> to vector<8x512xbf16>
    %c0_15 = arith.constant 0 : index
    %c0_16 = arith.constant 0 : index
    %17 = vector.load %arg5[%c0_15, %c0_16] : memref<512x256xbf16, #tpu.memory_space<vmem>>, vector<512x256xbf16>
    %cst_17 = arith.constant dense<0.000000e+00> : vector<8x256xf32>
    %18 = tpu.matmul %16, %17, %cst_17 {dimension_numbers = #tpu.dot_dimension_numbers<[1], [0], [0], [1], [0, 0, 1, 1], [], []>} : vector<8x512xbf16>, vector<512x256xbf16>, vector<8x256xf32> -> vector<8x256xf32>
    %c0_18 = arith.constant 0 : index
    %c0_19 = arith.constant 0 : index
    %19 = vector.load %arg6[%c0_18, %c0_19] : memref<1x256xf32, #tpu.memory_space<vmem>>, vector<1x256xf32>
    %20 = vector.broadcast %19 : vector<1x256xf32> to vector<8x256xf32>
    %21 = arith.addf %18, %20 : vector<8x256xf32>
    %cst_20 = arith.constant 0.000000e+00 : f32
    %22 = vector.broadcast %cst_20 : f32 to vector<8x256xf32>
    %23 = arith.maximumf %21, %22 : vector<8x256xf32>
    %24 = arith.truncf %23 : vector<8x256xf32> to vector<8x256xbf16>
    %c0_21 = arith.constant 0 : index
    %c0_22 = arith.constant 0 : index
    %25 = vector.load %arg7[%c0_21, %c0_22] : memref<256x128xbf16, #tpu.memory_space<vmem>>, vector<256x128xbf16>
    %cst_23 = arith.constant dense<0.000000e+00> : vector<8x128xf32>
    %26 = tpu.matmul %24, %25, %cst_23 {dimension_numbers = #tpu.dot_dimension_numbers<[1], [0], [0], [1], [0, 0, 1, 1], [], []>} : vector<8x256xbf16>, vector<256x128xbf16>, vector<8x128xf32> -> vector<8x128xf32>
    %c0_24 = arith.constant 0 : index
    %c0_25 = arith.constant 0 : index
    %27 = vector.load %arg8[%c0_24, %c0_25] : memref<1x128xf32, #tpu.memory_space<vmem>>, vector<1x128xf32>
    %28 = vector.broadcast %27 : vector<1x128xf32> to vector<8x128xf32>
    %29 = arith.addf %26, %28 : vector<8x128xf32>
    %cst_26 = arith.constant 0.000000e+00 : f32
    %30 = vector.broadcast %cst_26 : f32 to vector<8x128xf32>
    %31 = arith.maximumf %29, %30 : vector<8x128xf32>
    %32 = arith.truncf %31 : vector<8x128xf32> to vector<8x128xbf16>
    %c0_27 = arith.constant 0 : index
    %c0_28 = arith.constant 0 : index
    %33 = vector.load %arg9[%c0_27, %c0_28] : memref<128x256xbf16, #tpu.memory_space<vmem>>, vector<128x256xbf16>
    %cst_29 = arith.constant dense<0.000000e+00> : vector<8x256xf32>
    %34 = tpu.matmul %32, %33, %cst_29 {dimension_numbers = #tpu.dot_dimension_numbers<[1], [0], [0], [1], [0, 0, 1, 1], [], []>} : vector<8x128xbf16>, vector<128x256xbf16>, vector<8x256xf32> -> vector<8x256xf32>
    %c0_30 = arith.constant 0 : index
    %c0_31 = arith.constant 0 : index
    %35 = vector.load %arg10[%c0_30, %c0_31] : memref<1x256xf32, #tpu.memory_space<vmem>>, vector<1x256xf32>
    %36 = vector.broadcast %35 : vector<1x256xf32> to vector<8x256xf32>
    %37 = arith.addf %34, %36 : vector<8x256xf32>
    %cst_32 = arith.constant 0.000000e+00 : f32
    %38 = vector.broadcast %cst_32 : f32 to vector<8x256xf32>
    %39 = arith.maximumf %37, %38 : vector<8x256xf32>
    %40 = arith.truncf %39 : vector<8x256xf32> to vector<8x256xbf16>
    %c0_33 = arith.constant 0 : index
    %c0_34 = arith.constant 0 : index
    %41 = vector.load %arg11[%c0_33, %c0_34] : memref<256x128xbf16, #tpu.memory_space<vmem>>, vector<256x128xbf16>
    %cst_35 = arith.constant dense<0.000000e+00> : vector<8x128xf32>
    %42 = tpu.matmul %40, %41, %cst_35 {dimension_numbers = #tpu.dot_dimension_numbers<[1], [0], [0], [1], [0, 0, 1, 1], [], []>} : vector<8x256xbf16>, vector<256x128xbf16>, vector<8x128xf32> -> vector<8x128xf32>
    %c0_36 = arith.constant 0 : index
    %c0_37 = arith.constant 0 : index
    %43 = vector.load %arg12[%c0_36, %c0_37] : memref<1x128xf32, #tpu.memory_space<vmem>>, vector<1x128xf32>
    %44 = vector.broadcast %43 : vector<1x128xf32> to vector<8x128xf32>
    %45 = arith.addf %42, %44 : vector<8x128xf32>
    %46 = math.tanh %45 : vector<8x128xf32>
    %c0_38 = arith.constant 0 : index
    %c0_39 = arith.constant 0 : index
    %47 = vector.load %arg13[%c0_38, %c0_39] : memref<8x128xf32, #tpu.memory_space<vmem>>, vector<8x128xf32>
    tpu.vector_store %arg13[%c0_38, %c0_39], %46 {strides = array<i32>} : memref<8x128xf32, #tpu.memory_space<vmem>>, vector<8x128xf32>,
    return
  }
  func.func @transform_0(%arg0: i32) -> (i32, i32) {
    %c0_i32 = arith.constant 0 : i32
    %c0_i32_0 = arith.constant 0 : i32
    return %arg0, %c0_i32 : i32, i32
  }
  func.func @transform_1(%arg0: i32) -> (i32, i32) {
    %c0_i32 = arith.constant 0 : i32
    %c0_i32_0 = arith.constant 0 : i32
    return %arg0, %c0_i32 : i32, i32
  }
  func.func @transform_2(%arg0: i32) -> (i32, i32) {
    %c0_i32 = arith.constant 0 : i32
    %c0_i32_0 = arith.constant 0 : i32
    %c0_i32_1 = arith.constant 0 : i32
    return %c0_i32, %c0_i32_0 : i32, i32
  }
  func.func @transform_3(%arg0: i32) -> (i32, i32) {
    %c0_i32 = arith.constant 0 : i32
    %c0_i32_0 = arith.constant 0 : i32
    %c0_i32_1 = arith.constant 0 : i32
    return %c0_i32, %c0_i32_0 : i32, i32
  }
  func.func @transform_4(%arg0: i32) -> (i32, i32) {
    %c0_i32 = arith.constant 0 : i32
    %c0_i32_0 = arith.constant 0 : i32
    %c0_i32_1 = arith.constant 0 : i32
    return %c0_i32, %c0_i32_0 : i32, i32
  }
  func.func @transform_5(%arg0: i32) -> (i32, i32) {
    %c0_i32 = arith.constant 0 : i32
    %c0_i32_0 = arith.constant 0 : i32
    %c0_i32_1 = arith.constant 0 : i32
    return %c0_i32, %c0_i32_0 : i32, i32
  }
  func.func @transform_6(%arg0: i32) -> (i32, i32) {
    %c0_i32 = arith.constant 0 : i32
    %c0_i32_0 = arith.constant 0 : i32
    %c0_i32_1 = arith.constant 0 : i32
    return %c0_i32, %c0_i32_0 : i32, i32
  }
  func.func @transform_7(%arg0: i32) -> (i32, i32) {
    %c0_i32 = arith.constant 0 : i32
    %c0_i32_0 = arith.constant 0 : i32
    %c0_i32_1 = arith.constant 0 : i32
    return %c0_i32, %c0_i32_0 : i32, i32
  }
  func.func @transform_8(%arg0: i32) -> (i32, i32) {
    %c0_i32 = arith.constant 0 : i32
    %c0_i32_0 = arith.constant 0 : i32
    %c0_i32_1 = arith.constant 0 : i32
    return %c0_i32, %c0_i32_0 : i32, i32
  }
  func.func @transform_9(%arg0: i32) -> (i32, i32) {
    %c0_i32 = arith.constant 0 : i32
    %c0_i32_0 = arith.constant 0 : i32
    %c0_i32_1 = arith.constant 0 : i32
    return %c0_i32, %c0_i32_0 : i32, i32
  }
  func.func @transform_10(%arg0: i32) -> (i32, i32) {
    %c0_i32 = arith.constant 0 : i32
    %c0_i32_0 = arith.constant 0 : i32
    %c0_i32_1 = arith.constant 0 : i32
    return %c0_i32, %c0_i32_0 : i32, i32
  }
  func.func @transform_11(%arg0: i32) -> (i32, i32) {
    %c0_i32 = arith.constant 0 : i32
    %c0_i32_0 = arith.constant 0 : i32
    %c0_i32_1 = arith.constant 0 : i32
    return %c0_i32, %c0_i32_0 : i32, i32
  }
  func.func @transform_12(%arg0: i32) -> (i32, i32) {
    %c0_i32 = arith.constant 0 : i32
    %c0_i32_0 = arith.constant 0 : i32
    return %arg0, %c0_i32 : i32, i32
  }
}

</mosaic_0001>

<llo_original>
// kernel: generator_forward.1
$region0: #{generator_forward.1}
  #allocation0 [shape = 'u32[]', space=smem, size = 0x4, offset = 0x4, fixed_abs, tag = 'smem constant byte address 0x4 - core index']
  #allocation1 [shape = 'u32[144,128]{1,0:T(1,128)}', space=vmem, size = 0x12000, scoped, tag = 'internal scratch']
  #allocation2 [shape = 'bf16[8,256]{1,0:T(8,128)(2,1)}', space=vmem, size = 0x1000, scoped, tag = 'scratch operand']
  %s0 = inlined_call_operand.vmem [shape: f32[8,128], index: 0, kind: input, shape index: {}]
  %s1 = inlined_call_operand.vmem [shape: f32[8,16], index: 1, kind: input, shape index: {}]
  %s2 = inlined_call_operand.hbm [shape: bf16[256,512], index: 2, kind: input, shape index: {}]
  %s3 = inlined_call_operand.vmem [shape: f32[1,512], index: 3, kind: input, shape index: {}]
  %s4 = inlined_call_operand.hbm [shape: bf16[512,256], index: 4, kind: input, shape index: {}]
  %s5 = inlined_call_operand.vmem [shape: f32[1,256], index: 5, kind: input, shape index: {}]
  %s6 = inlined_call_operand.hbm [shape: bf16[256,128], index: 6, kind: input, shape index: {}]
  %s7 = inlined_call_operand.vmem [shape: f32[1,128], index: 7, kind: input, shape index: {}]
  %s8 = inlined_call_operand.hbm [shape: bf16[128,256], index: 8, kind: input, shape index: {}]
  %s9 = inlined_call_operand.vmem [shape: f32[1,256], index: 9, kind: input, shape index: {}]
  %s10 = inlined_call_operand.hbm [shape: bf16[256,128], index: 10, kind: input, shape index: {}]
  %s11 = inlined_call_operand.vmem [shape: f32[1,128], index: 11, kind: input, shape index: {}]
  %s12 = inlined_call_operand.vmem [shape: f32[8,128], index: 12, kind: output, shape index: {}]
  %s13 = sld [smem:[#allocation0]]
  $region78: #{generator_forward.1} parent=0
    _
  %s15 = ssub.s32 1, %s13
  %s16 = scalar_select 0, %s15, %s13
  $region1: #{generator_forward.1} parent=0
    #allocation3 [shape = 'u8[262144]{0}', space=vmem, size = 0x40000, scoped, tag = 'input window, operand 2, single buffered']
    #allocation4 [shape = 's32[1]{0}', space=sflag, size = 0x4, scoped, tag = 'scoped memory for generator_forward.1']
    #allocation5 [shape = 'u8[262144]{0}', space=vmem, size = 0x40000, scoped, tag = 'input window, operand 4, single buffered']
    #allocation6 [shape = 's32[1]{0}', space=sflag, size = 0x4, scoped, tag = 'scoped memory for generator_forward.1']
    #allocation7 [shape = 'u8[65536]{0}', space=vmem, size = 0x10000, scoped, tag = 'input window, operand 6, single buffered']
    #allocation8 [shape = 'u8[65536]{0}', space=vmem, size = 0x10000, scoped, tag = 'input window, operand 8, single buffered']
    #allocation9 [shape = 's32[1]{0}', space=sflag, size = 0x4, scoped, tag = 'scoped memory for generator_forward.1']
    #allocation10 [shape = 'u8[65536]{0}', space=vmem, size = 0x10000, scoped, tag = 'input window, operand 10, single buffered']
    %17 = vsyncpa [#allocation4], 0
    %18 = vsyncpa [#allocation6], 0
    %19 = vsyncpa [#allocation9], 0
    // Predicated region
    $region2: #{generator_forward.1} parent=1 // pred_check
      _
    $region3: #{generator_forward.1} parent=1 // pred_check_branch
      %21 = sbr.rel (0) target = $region5
    $region4: #{generator_forward.1} parent=1 // pred_region
      _
    $region5: #{generator_forward.1} parent=1 // pred_fallthru
      _
    // Predicated region
    $region6: #{generator_forward.1} parent=1 // pred_check
      _
    $region7: #{generator_forward.1} parent=1 // pred_check_branch
      %23 = sbr.rel (0) target = $region9
    $region8: #{generator_forward.1} parent=1 // pred_region
      _
    $region9: #{generator_forward.1} parent=1 // pred_fallthru
      _
    // Predicated region
    $region10: #{generator_forward.1} parent=1 // pred_check
      _
    $region11: #{generator_forward.1} parent=1 // pred_check_branch
      %25 = sbr.rel (0) target = $region13
    $region12: #{generator_forward.1} parent=1 // pred_region
      %s27 = ssub.s32 8192, 8192
      %28 = vsyncadd [#allocation4], %s27
      %s29 = sshll.u32 [#allocation3], 4
      %s30 = int_to_ptr.vmem [resolvable:$true] %s29
      %35 = dma.hbm_to_vmem [thread:$0]  %s2, 8192, %s30, [#allocation4], 256, 256, 16
    $region13: #{generator_forward.1} parent=1 // pred_fallthru
      _
    // Predicated region
    $region14: #{generator_forward.1} parent=1 // pred_check
      _
    $region15: #{generator_forward.1} parent=1 // pred_check_branch
      %37 = sbr.rel (0) target = $region17
    $region16: #{generator_forward.1} parent=1 // pred_region
      _
    $region17: #{generator_forward.1} parent=1 // pred_fallthru
      _
    // Predicated region
    $region18: #{generator_forward.1} parent=1 // pred_check
      _
    $region19: #{generator_forward.1} parent=1 // pred_check_branch
      %39 = sbr.rel (0) target = $region21
    $region20: #{generator_forward.1} parent=1 // pred_region
      %s41 = ssub.s32 8192, 8192
      %42 = vsyncadd [#allocation6], %s41
      %s43 = sshll.u32 [#allocation5], 4
      %s44 = int_to_ptr.vmem [resolvable:$true] %s43
      %49 = dma.hbm_to_vmem [thread:$0]  %s4, 8192, %s44, [#allocation6], 128, 128, 8
    $region21: #{generator_forward.1} parent=1 // pred_fallthru
      _
    // Predicated region
    $region22: #{generator_forward.1} parent=1 // pred_check
      _
    $region23: #{generator_forward.1} parent=1 // pred_check_branch
      %51 = sbr.rel (0) target = $region25
    $region24: #{generator_forward.1} parent=1 // pred_region
      _
    $region25: #{generator_forward.1} parent=1 // pred_fallthru
      _
    // Predicated region
    $region26: #{generator_forward.1} parent=1 // pred_check
      _
    $region27: #{generator_forward.1} parent=1 // pred_check_branch
      %53 = sbr.rel (0) target = $region29
    $region28: #{generator_forward.1} parent=1 // pred_region
      %s55 = ssub.s32 2048, 2048
      %56 = vsyncadd [#allocation6], %s55
      %s57 = sshll.u32 [#allocation7], 4
      %s58 = int_to_ptr.vmem [resolvable:$true] %s57
      %63 = dma.hbm_to_vmem [thread:$0]  %s6, 2048, %s58, [#allocation6], 64, 64, 4
    $region29: #{generator_forward.1} parent=1 // pred_fallthru
      _
    // Predicated region
    $region30: #{generator_forward.1} parent=1 // pred_check
      _
    $region31: #{generator_forward.1} parent=1 // pred_check_branch
      %65 = sbr.rel (0) target = $region33
    $region32: #{generator_forward.1} parent=1 // pred_region
      _
    $region33: #{generator_forward.1} parent=1 // pred_fallthru
      _
    // Predicated region
    $region34: #{generator_forward.1} parent=1 // pred_check
      _
    $region35: #{generator_forward.1} parent=1 // pred_check_branch
      %67 = sbr.rel (0) target = $region37
    $region36: #{generator_forward.1} parent=1 // pred_region
      %s69 = ssub.s32 2048, 2048
      %70 = vsyncadd [#allocation9], %s69
      %s71 = sshll.u32 [#allocation8], 4
      %s72 = int_to_ptr.vmem [resolvable:$true] %s71
      %77 = dma.hbm_to_vmem [thread:$0]  %s8, 2048, %s72, [#allocation9], 128, 128, 8
    $region37: #{generator_forward.1} parent=1 // pred_fallthru
      _
    // Predicated region
    $region38: #{generator_forward.1} parent=1 // pred_check
      _
    $region39: #{generator_forward.1} parent=1 // pred_check_branch
      %79 = sbr.rel (0) target = $region41
    $region40: #{generator_forward.1} parent=1 // pred_region
      _
    $region41: #{generator_forward.1} parent=1 // pred_fallthru
      _
    // Predicated region
    $region42: #{generator_forward.1} parent=1 // pred_check
      _
    $region43: #{generator_forward.1} parent=1 // pred_check_branch
      %81 = sbr.rel (0) target = $region45
    $region44: #{generator_forward.1} parent=1 // pred_region
      %s83 = ssub.s32 2048, 2048
      %84 = vsyncadd [#allocation9], %s83
      %s85 = sshll.u32 [#allocation10], 4
      %s86 = int_to_ptr.vmem [resolvable:$true] %s85
      %91 = dma.hbm_to_vmem [thread:$0]  %s10, 2048, %s86, [#allocation9], 64, 64, 4
    $region45: #{generator_forward.1} parent=1 // pred_fallthru
      _
    // Predicated region
    $region46: #{generator_forward.1} parent=1 // pred_check
      _
    $region47: #{generator_forward.1} parent=1 // pred_check_branch
      %93 = sbr.rel (0) target = $region49
    $region48: #{generator_forward.1} parent=1 // pred_region
      _
    $region49: #{generator_forward.1} parent=1 // pred_fallthru
      _
    // Predicated region
    $region50: #{generator_forward.1} parent=1 // pred_check
      _
    $region51: #{generator_forward.1} parent=1 // pred_check_branch
      %95 = sbr.rel (0) target = $region53
    $region52: #{generator_forward.1} parent=1 // pred_region
      %96 = dma.done [#allocation4], 8192
    $region53: #{generator_forward.1} parent=1 // pred_fallthru
      _
    // Predicated region
    $region54: #{generator_forward.1} parent=1 // pred_check
      _
    $region55: #{generator_forward.1} parent=1 // pred_check_branch
      %98 = sbr.rel (0) target = $region57
    $region56: #{generator_forward.1} parent=1 // pred_region
      %99 = dma.done [#allocation6], 8192
    $region57: #{generator_forward.1} parent=1 // pred_fallthru
      _
    // Predicated region
    $region58: #{generator_forward.1} parent=1 // pred_check
      _
    $region59: #{generator_forward.1} parent=1 // pred_check_branch
      %101 = sbr.rel (0) target = $region61
    $region60: #{generator_forward.1} parent=1 // pred_region
      %102 = dma.done [#allocation6], 2048
    $region61: #{generator_forward.1} parent=1 // pred_fallthru
      _
    // Predicated region
    $region62: #{generator_forward.1} parent=1 // pred_check
      _
    $region63: #{generator_forward.1} parent=1 // pred_check_branch
      %104 = sbr.rel (0) target = $region65
    $region64: #{generator_forward.1} parent=1 // pred_region
      %105 = dma.done [#allocation9], 2048
    $region65: #{generator_forward.1} parent=1 // pred_fallthru
      _
    // Predicated region
    $region66: #{generator_forward.1} parent=1 // pred_check
      _
    $region67: #{generator_forward.1} parent=1 // pred_check_branch
      %107 = sbr.rel (0) target = $region69
    $region68: #{generator_forward.1} parent=1 // pred_region
      %108 = dma.done [#allocation9], 2048
    $region69: #{generator_forward.1} parent=1 // pred_fallthru
      _
    %v110 = vld [vmem:[%s0] sm:$0xff]
    %v111 = vpack.c.bf16 %v110, %v110
    %112 = vst [vmem:[#allocation2] sm:$0xf] %v111
    %v113 = vld [vmem:[%s1] sm:$0xff]
    %v114 = vpack.c.bf16 %v113, %v113
    %vm115 = vcmask 125952
    %116 = vst.msk [vmem:[#allocation2 + $0x4] sm:$0xf] %vm115, %v114
    %vm117 = vcmask 1043584
    %118 = vst.msk [vmem:[#allocation2 + $0x4] sm:$0xf] %vm117, 0
    %v119 = vld [vmem:[#allocation2] sm:$0xff]
    %v120 = vld [vmem:[#allocation3] sm:$0xff]
    %v121 = vld [vmem:[#allocation3 + $0x8] sm:$0xff]
    %v122 = vld [vmem:[#allocation3 + $0x10] sm:$0xff]
    %v123 = vld [vmem:[#allocation3 + $0x18] sm:$0xff]
    %v124 = vld [vmem:[#allocation3 + $0x20] sm:$0xff]
    %v125 = vld [vmem:[#allocation3 + $0x28] sm:$0xff]
    %v126 = vld [vmem:[#allocation3 + $0x30] sm:$0xff]
    %v127 = vld [vmem:[#allocation3 + $0x38] sm:$0xff]
    %v128 = vld [vmem:[#allocation3 + $0x40] sm:$0xff]
    %v129 = vld [vmem:[#allocation3 + $0x48] sm:$0xff]
    %v130 = vld [vmem:[#allocation3 + $0x50] sm:$0xff]
    %v131 = vld [vmem:[#allocation3 + $0x58] sm:$0xff]
    %v132 = vld [vmem:[#allocation3 + $0x60] sm:$0xff]
    %v133 = vld [vmem:[#allocation3 + $0x68] sm:$0xff]
    %v134 = vld [vmem:[#allocation3 + $0x70] sm:$0xff]
    %v135 = vld [vmem:[#allocation3 + $0x78] sm:$0xff]
    %v136 = vld [vmem:[#allocation3 + $0x80] sm:$0xff]
    %v137 = vld [vmem:[#allocation3 + $0x88] sm:$0xff]
    %v138 = vld [vmem:[#allocation3 + $0x90] sm:$0xff]
    %v139 = vld [vmem:[#allocation3 + $0x98] sm:$0xff]
    %v140 = vld [vmem:[#allocation3 + $0xa0] sm:$0xff]
    %v141 = vld [vmem:[#allocation3 + $0xa8] sm:$0xff]
    %v142 = vld [vmem:[#allocation3 + $0xb0] sm:$0xff]
    %v143 = vld [vmem:[#allocation3 + $0xb8] sm:$0xff]
    %v144 = vld [vmem:[#allocation3 + $0xc0] sm:$0xff]
    %v145 = vld [vmem:[#allocation3 + $0xc8] sm:$0xff]
    %v146 = vld [vmem:[#allocation3 + $0xd0] sm:$0xff]
    %v147 = vld [vmem:[#allocation3 + $0xd8] sm:$0xff]
    %v148 = vld [vmem:[#allocation3 + $0xe0] sm:$0xff]
    %v149 = vld [vmem:[#allocation3 + $0xe8] sm:$0xff]
    %v150 = vld [vmem:[#allocation3 + $0xf0] sm:$0xff]
    %v151 = vld [vmem:[#allocation3 + $0xf8] sm:$0xff]
    %v152 = vld [vmem:[#allocation3 + $0x100] sm:$0xff]
    %v153 = vld [vmem:[#allocation3 + $0x108] sm:$0xff]
    %v154 = vld [vmem:[#allocation3 + $0x110] sm:$0xff]
    %v155 = vld [vmem:[#allocation3 + $0x118] sm:$0xff]
    %v156 = vld [vmem:[#allocation3 + $0x120] sm:$0xff]
    %v157 = vld [vmem:[#allocation3 + $0x128] sm:$0xff]
    %v158 = vld [vmem:[#allocation3 + $0x130] sm:$0xff]
    %v159 = vld [vmem:[#allocation3 + $0x138] sm:$0xff]
    %v160 = vld [vmem:[#allocation3 + $0x140] sm:$0xff]
    %v161 = vld [vmem:[#allocation3 + $0x148] sm:$0xff]
    %v162 = vld [vmem:[#allocation3 + $0x150] sm:$0xff]
    %v163 = vld [vmem:[#allocation3 + $0x158] sm:$0xff]
    %v164 = vld [vmem:[#allocation3 + $0x160] sm:$0xff]
    %v165 = vld [vmem:[#allocation3 + $0x168] sm:$0xff]
    %v166 = vld [vmem:[#allocation3 + $0x170] sm:$0xff]
    %v167 = vld [vmem:[#allocation3 + $0x178] sm:$0xff]
    %v168 = vld [vmem:[#allocation3 + $0x180] sm:$0xff]
    %v169 = vld [vmem:[#allocation3 + $0x188] sm:$0xff]
    %v170 = vld [vmem:[#allocation3 + $0x190] sm:$0xff]
    %v171 = vld [vmem:[#allocation3 + $0x198] sm:$0xff]
    %v172 = vld [vmem:[#allocation3 + $0x1a0] sm:$0xff]
    %v173 = vld [vmem:[#allocation3 + $0x1a8] sm:$0xff]
    %v174 = vld [vmem:[#allocation3 + $0x1b0] sm:$0xff]
    %v175 = vld [vmem:[#allocation3 + $0x1b8] sm:$0xff]
    %v176 = vld [vmem:[#allocation3 + $0x1c0] sm:$0xff]
    %v177 = vld [vmem:[#allocation3 + $0x1c8] sm:$0xff]
    %v178 = vld [vmem:[#allocation3 + $0x1d0] sm:$0xff]
    %v179 = vld [vmem:[#allocation3 + $0x1d8] sm:$0xff]
    %v180 = vld [vmem:[#allocation3 + $0x1e0] sm:$0xff]
    %v181 = vld [vmem:[#allocation3 + $0x1e8] sm:$0xff]
    %v182 = vld [vmem:[#allocation3 + $0x1f0] sm:$0xff]
    %v183 = vld [vmem:[#allocation3 + $0x1f8] sm:$0xff]
    %v184 = vld [vmem:[%s3] sm:$0xf]
    %v186 = vlaneseq
    %v187 = vshrl.u32 %v186, 7
    %v188 = vsub.s32 0, %v187
    %v189 = vrot.slane %v184, %v188
    %v190 = vlaneseq
    %v191 = vshrl.u32 %v190, 7
    %v192 = vsub.s32 1, %v191
    %v193 = vrot.slane %v184, %v192
    %v194 = vlaneseq
    %v195 = vshrl.u32 %v194, 7
    %v196 = vsub.s32 2, %v195
    %v197 = vrot.slane %v184, %v196
    %v198 = vlaneseq
    %v199 = vshrl.u32 %v198, 7
    %v200 = vsub.s32 3, %v199
    %v201 = vrot.slane %v184, %v200
    %v207 = vunpack.c.l.b16 %v119
    %v208 = vunpack.c.h.b16 %v119
    %v209 = vpack.c.b16 %v207, %v207
    %v210 = vpack.c.b16 %v208, %v208
    %v277 = vunpack.c.l.b16 %v120
    %v278 = vunpack.c.h.b16 %v120
    %v279 = vunpack.c.l.b16 %v121
    %v280 = vunpack.c.h.b16 %v121
    %v281 = vunpack.c.l.b16 %v122
    %v282 = vunpack.c.h.b16 %v122
    %v283 = vunpack.c.l.b16 %v123
    %v284 = vunpack.c.h.b16 %v123
    %v285 = vunpack.c.l.b16 %v124
    %v286 = vunpack.c.h.b16 %v124
    %v287 = vunpack.c.l.b16 %v125
    %v288 = vunpack.c.h.b16 %v125
    %v289 = vunpack.c.l.b16 %v126
    %v290 = vunpack.c.h.b16 %v126
    %v291 = vunpack.c.l.b16 %v127
    %v292 = vunpack.c.h.b16 %v127
    %v293 = vunpack.c.l.b16 %v128
    %v294 = vunpack.c.h.b16 %v128
    %v295 = vunpack.c.l.b16 %v129
    %v296 = vunpack.c.h.b16 %v129
    %v297 = vunpack.c.l.b16 %v130
    %v298 = vunpack.c.h.b16 %v130
    %v299 = vunpack.c.l.b16 %v131
    %v300 = vunpack.c.h.b16 %v131
    %v301 = vunpack.c.l.b16 %v132
    %v302 = vunpack.c.h.b16 %v132
    %v303 = vunpack.c.l.b16 %v133
    %v304 = vunpack.c.h.b16 %v133
    %v305 = vunpack.c.l.b16 %v134
    %v306 = vunpack.c.h.b16 %v134
    %v307 = vunpack.c.l.b16 %v135
    %v308 = vunpack.c.h.b16 %v135
    %v309 = vunpack.c.l.b16 %v136
    %v310 = vunpack.c.h.b16 %v136
    %v311 = vunpack.c.l.b16 %v137
    %v312 = vunpack.c.h.b16 %v137
    %v313 = vunpack.c.l.b16 %v138
    %v314 = vunpack.c.h.b16 %v138
    %v315 = vunpack.c.l.b16 %v139
    %v316 = vunpack.c.h.b16 %v139
    %v317 = vunpack.c.l.b16 %v140
    %v318 = vunpack.c.h.b16 %v140
    %v319 = vunpack.c.l.b16 %v141
    %v320 = vunpack.c.h.b16 %v141
    %v321 = vunpack.c.l.b16 %v142
    %v322 = vunpack.c.h.b16 %v142
    %v323 = vunpack.c.l.b16 %v143
    %v324 = vunpack.c.h.b16 %v143
    %v325 = vunpack.c.l.b16 %v144
    %v326 = vunpack.c.h.b16 %v144
    %v327 = vunpack.c.l.b16 %v145
    %v328 = vunpack.c.h.b16 %v145
    %v329 = vunpack.c.l.b16 %v146
    %v330 = vunpack.c.h.b16 %v146
    %v331 = vunpack.c.l.b16 %v147
    %v332 = vunpack.c.h.b16 %v147
    %v333 = vunpack.c.l.b16 %v148
    %v334 = vunpack.c.h.b16 %v148
    %v335 = vunpack.c.l.b16 %v149
    %v336 = vunpack.c.h.b16 %v149
    %v337 = vunpack.c.l.b16 %v150
    %v338 = vunpack.c.h.b16 %v150
    %v339 = vunpack.c.l.b16 %v151
    %v340 = vunpack.c.h.b16 %v151
    %v341 = vunpack.c.l.b16 %v152
    %v342 = vunpack.c.h.b16 %v152
    %v343 = vunpack.c.l.b16 %v153
    %v344 = vunpack.c.h.b16 %v153
    %v345 = vunpack.c.l.b16 %v154
    %v346 = vunpack.c.h.b16 %v154
    %v347 = vunpack.c.l.b16 %v155
    %v348 = vunpack.c.h.b16 %v155
    %v349 = vunpack.c.l.b16 %v156
    %v350 = vunpack.c.h.b16 %v156
    %v351 = vunpack.c.l.b16 %v157
    %v352 = vunpack.c.h.b16 %v157
    %v353 = vunpack.c.l.b16 %v158
    %v354 = vunpack.c.h.b16 %v158
    %v355 = vunpack.c.l.b16 %v159
    %v356 = vunpack.c.h.b16 %v159
    %v357 = vunpack.c.l.b16 %v160
    %v358 = vunpack.c.h.b16 %v160
    %v359 = vunpack.c.l.b16 %v161
    %v360 = vunpack.c.h.b16 %v161
    %v361 = vunpack.c.l.b16 %v162
    %v362 = vunpack.c.h.b16 %v162
    %v363 = vunpack.c.l.b16 %v163
    %v364 = vunpack.c.h.b16 %v163
    %v365 = vunpack.c.l.b16 %v164
    %v366 = vunpack.c.h.b16 %v164
    %v367 = vunpack.c.l.b16 %v165
    %v368 = vunpack.c.h.b16 %v165
    %v369 = vunpack.c.l.b16 %v166
    %v370 = vunpack.c.h.b16 %v166
    %v371 = vunpack.c.l.b16 %v167
    %v372 = vunpack.c.h.b16 %v167
    %v373 = vunpack.c.l.b16 %v168
    %v374 = vunpack.c.h.b16 %v168
    %v375 = vunpack.c.l.b16 %v169
    %v376 = vunpack.c.h.b16 %v169
    %v377 = vunpack.c.l.b16 %v170
    %v378 = vunpack.c.h.b16 %v170
    %v379 = vunpack.c.l.b16 %v171
    %v380 = vunpack.c.h.b16 %v171
    %v381 = vunpack.c.l.b16 %v172
    %v382 = vunpack.c.h.b16 %v172
    %v383 = vunpack.c.l.b16 %v173
    %v384 = vunpack.c.h.b16 %v173
    %v385 = vunpack.c.l.b16 %v174
    %v386 = vunpack.c.h.b16 %v174
    %v387 = vunpack.c.l.b16 %v175
    %v388 = vunpack.c.h.b16 %v175
    %v389 = vunpack.c.l.b16 %v176
    %v390 = vunpack.c.h.b16 %v176
    %v391 = vunpack.c.l.b16 %v177
    %v392 = vunpack.c.h.b16 %v177
    %v393 = vunpack.c.l.b16 %v178
    %v394 = vunpack.c.h.b16 %v178
    %v395 = vunpack.c.l.b16 %v179
    %v396 = vunpack.c.h.b16 %v179
    %v397 = vunpack.c.l.b16 %v180
    %v398 = vunpack.c.h.b16 %v180
    %v399 = vunpack.c.l.b16 %v181
    %v400 = vunpack.c.h.b16 %v181
    %v401 = vunpack.c.l.b16 %v182
    %v402 = vunpack.c.h.b16 %v182
    %v403 = vunpack.c.l.b16 %v183
    %v404 = vunpack.c.h.b16 %v183
    %v405 = vpack.c.b16 %v281, %v277
    %v406 = vpack.c.b16 %v282, %v278
    %v407 = vpack.c.b16 %v283, %v279
    %v408 = vpack.c.b16 %v284, %v280
    %v409 = vpack.c.b16 %v289, %v285
    %v410 = vpack.c.b16 %v290, %v286
    %v411 = vpack.c.b16 %v291, %v287
    %v412 = vpack.c.b16 %v292, %v288
    %v413 = vpack.c.b16 %v297, %v293
    %v414 = vpack.c.b16 %v298, %v294
    %v415 = vpack.c.b16 %v299, %v295
    %v416 = vpack.c.b16 %v300, %v296
    %v417 = vpack.c.b16 %v305, %v301
    %v418 = vpack.c.b16 %v306, %v302
    %v419 = vpack.c.b16 %v307, %v303
    %v420 = vpack.c.b16 %v308, %v304
    %v421 = vpack.c.b16 %v313, %v309
    %v422 = vpack.c.b16 %v314, %v310
    %v423 = vpack.c.b16 %v315, %v311
    %v424 = vpack.c.b16 %v316, %v312
    %v425 = vpack.c.b16 %v321, %v317
    %v426 = vpack.c.b16 %v322, %v318
    %v427 = vpack.c.b16 %v323, %v319
    %v428 = vpack.c.b16 %v324, %v320
    %v429 = vpack.c.b16 %v329, %v325
    %v430 = vpack.c.b16 %v330, %v326
    %v431 = vpack.c.b16 %v331, %v327
    %v432 = vpack.c.b16 %v332, %v328
    %v433 = vpack.c.b16 %v337, %v333
    %v434 = vpack.c.b16 %v338, %v334
    %v435 = vpack.c.b16 %v339, %v335
    %v436 = vpack.c.b16 %v340, %v336
    %v437 = vpack.c.b16 %v345, %v341
    %v438 = vpack.c.b16 %v346, %v342
    %v439 = vpack.c.b16 %v347, %v343
    %v440 = vpack.c.b16 %v348, %v344
    %v441 = vpack.c.b16 %v353, %v349
    %v442 = vpack.c.b16 %v354, %v350
    %v443 = vpack.c.b16 %v355, %v351
    %v444 = vpack.c.b16 %v356, %v352
    %v445 = vpack.c.b16 %v361, %v357
    %v446 = vpack.c.b16 %v362, %v358
    %v447 = vpack.c.b16 %v363, %v359
    %v448 = vpack.c.b16 %v364, %v360
    %v449 = vpack.c.b16 %v369, %v365
    %v450 = vpack.c.b16 %v370, %v366
    %v451 = vpack.c.b16 %v371, %v367
    %v452 = vpack.c.b16 %v372, %v368
    %v453 = vpack.c.b16 %v377, %v373
    %v454 = vpack.c.b16 %v378, %v374
    %v455 = vpack.c.b16 %v379, %v375
    %v456 = vpack.c.b16 %v380, %v376
    %v457 = vpack.c.b16 %v385, %v381
    %v458 = vpack.c.b16 %v386, %v382
    %v459 = vpack.c.b16 %v387, %v383
    %v460 = vpack.c.b16 %v388, %v384
    %v461 = vpack.c.b16 %v393, %v389
    %v462 = vpack.c.b16 %v394, %v390
    %v463 = vpack.c.b16 %v395, %v391
    %v464 = vpack.c.b16 %v396, %v392
    %v465 = vpack.c.b16 %v401, %v397
    %v466 = vpack.c.b16 %v402, %v398
    %v467 = vpack.c.b16 %v403, %v399
    %v468 = vpack.c.b16 %v404, %v400
    %533 = vmatprep.subr.bf16.mxu0 %v434
    %534 = vmatpush1.bf16.msra.mxu0 %v433
    %535 = vmatprep.subr.bf16.mxu0 %v430
    %536 = vmatpush1.bf16.msra.mxu0 %v429
    %537 = vmatprep.subr.bf16.mxu0 %v426
    %538 = vmatpush1.bf16.msra.mxu0 %v425
    %539 = vmatprep.subr.bf16.mxu0 %v422
    %540 = vmatpush1.bf16.msra.mxu0 %v421
    %541 = vmatprep.subr.bf16.mxu0 %v418
    %542 = vmatpush1.bf16.msra.mxu0 %v417
    %543 = vmatprep.subr.bf16.mxu0 %v414
    %544 = vmatpush1.bf16.msra.mxu0 %v413
    %545 = vmatprep.subr.bf16.mxu0 %v410
    %546 = vmatpush1.bf16.msra.mxu0 %v409
    %547 = vmatprep.subr.bf16.mxu0 %v406
    %548 = vmatpush1.bf16.msra.mxu0 %v405
    %549 = vmatprep.subr.bf16.mxu0 %v466
    %550 = vmatpush2.bf16.msra.mxu0 %v465
    %551 = vmatprep.subr.bf16.mxu0 %v462
    %552 = vmatpush2.bf16.msra.mxu0 %v461
    %553 = vmatprep.subr.bf16.mxu0 %v458
    %554 = vmatpush2.bf16.msra.mxu0 %v457
    %555 = vmatprep.subr.bf16.mxu0 %v454
    %556 = vmatpush2.bf16.msra.mxu0 %v453
    %557 = vmatprep.subr.bf16.mxu0 %v450
    %558 = vmatpush2.bf16.msra.mxu0 %v449
    %559 = vmatprep.subr.bf16.mxu0 %v446
    %560 = vmatpush2.bf16.msra.mxu0 %v445
    %561 = vmatprep.subr.bf16.mxu0 %v442
    %562 = vmatpush2.bf16.msra.mxu0 %v441
    %563 = vmatprep.subr.bf16.mxu0 %v438
    %564 = vmatpush2.bf16.msra.mxu0 %v437
    %565 = vmatprep.mubr.bf16.mxu0 %v210
    %566 = vmatmul.mubr.bf16.gmra.mxu0 %v209
    %v567 = vpop.f32.mrf.mxu0
    %v568 = vadd.f32 %v189, %v567
    %v569 = vpop.f32.mrf.mxu0
    %v570 = vadd.f32 %v193, %v569
    %v571 = vpop.f32.mrf.mxu0
    %v572 = vpop.f32.mrf.mxu0
    %573 = vdwg.mxu0
    %574 = vmatprep.subr.bf16.mxu0 %v436
    %575 = vmatpush1.bf16.msra.mxu0 %v435
    %576 = vmatprep.subr.bf16.mxu0 %v432
    %577 = vmatpush1.bf16.msra.mxu0 %v431
    %578 = vmatprep.subr.bf16.mxu0 %v428
    %579 = vmatpush1.bf16.msra.mxu0 %v427
    %580 = vmatprep.subr.bf16.mxu0 %v424
    %581 = vmatpush1.bf16.msra.mxu0 %v423
    %582 = vmatprep.subr.bf16.mxu0 %v420
    %583 = vmatpush1.bf16.msra.mxu0 %v419
    %584 = vmatprep.subr.bf16.mxu0 %v416
    %585 = vmatpush1.bf16.msra.mxu0 %v415
    %586 = vmatprep.subr.bf16.mxu0 %v412
    %587 = vmatpush1.bf16.msra.mxu0 %v411
    %588 = vmatprep.subr.bf16.mxu0 %v408
    %589 = vmatpush1.bf16.msra.mxu0 %v407
    %590 = vmatprep.subr.bf16.mxu0 %v468
    %591 = vmatpush2.bf16.msra.mxu0 %v467
    %592 = vmatprep.subr.bf16.mxu0 %v464
    %593 = vmatpush2.bf16.msra.mxu0 %v463
    %594 = vmatprep.subr.bf16.mxu0 %v460
    %595 = vmatpush2.bf16.msra.mxu0 %v459
    %596 = vmatprep.subr.bf16.mxu0 %v456
    %597 = vmatpush2.bf16.msra.mxu0 %v455
    %598 = vmatprep.subr.bf16.mxu0 %v452
    %599 = vmatpush2.bf16.msra.mxu0 %v451
    %600 = vmatprep.subr.bf16.mxu0 %v448
    %601 = vmatpush2.bf16.msra.mxu0 %v447
    %602 = vmatprep.subr.bf16.mxu0 %v444
    %603 = vmatpush2.bf16.msra.mxu0 %v443
    %604 = vmatprep.subr.bf16.mxu0 %v440
    %605 = vmatpush2.bf16.msra.mxu0 %v439
    %606 = vmatprep.mubr.bf16.mxu0 %v210
    %607 = vmatmul.mubr.bf16.gmra.mxu0 %v209
    %v608 = vpop.f32.mrf.mxu0
    %v609 = vadd.f32 %v197, %v608
    %v610 = vpop.f32.mrf.mxu0
    %v611 = vadd.f32 %v201, %v610
    %v612 = vpop.f32.mrf.mxu0
    %v613 = vpop.f32.mrf.mxu0
    %614 = vdwg.mxu0
    %v615 = vmax.f32 %v568, 0.0
    %v616 = vmax.f32 %v570, 0.0
    %v617 = vmax.f32 %v609, 0.0
    %v618 = vmax.f32 %v611, 0.0
    %v619 = vpack.c.bf16 %v615, %v615
    %v620 = vpack.c.bf16 %v616, %v616
    %v621 = vpack.c.bf16 %v617, %v617
    %v622 = vpack.c.bf16 %v618, %v618
    %v623 = vld [vmem:[#allocation5] sm:$0xff]
    %v624 = vld [vmem:[#allocation5 + $0x8] sm:$0xff]
    %v625 = vld [vmem:[#allocation5 + $0x10] sm:$0xff]
    %v626 = vld [vmem:[#allocation5 + $0x18] sm:$0xff]
    %v627 = vld [vmem:[#allocation5 + $0x20] sm:$0xff]
    %v628 = vld [vmem:[#allocation5 + $0x28] sm:$0xff]
    %v629 = vld [vmem:[#allocation5 + $0x30] sm:$0xff]
    %v630 = vld [vmem:[#allocation5 + $0x38] sm:$0xff]
    %v631 = vld [vmem:[#allocation5 + $0x40] sm:$0xff]
    %v632 = vld [vmem:[#allocation5 + $0x48] sm:$0xff]
    %v633 = vld [vmem:[#allocation5 + $0x50] sm:$0xff]
    %v634 = vld [vmem:[#allocation5 + $0x58] sm:$0xff]
    %v635 = vld [vmem:[#allocation5 + $0x60] sm:$0xff]
    %v636 = vld [vmem:[#allocation5 + $0x68] sm:$0xff]
    %v637 = vld [vmem:[#allocation5 + $0x70] sm:$0xff]
    %v638 = vld [vmem:[#allocation5 + $0x78] sm:$0xff]
    %v639 = vld [vmem:[#allocation5 + $0x80] sm:$0xff]
    %v640 = vld [vmem:[#allocation5 + $0x88] sm:$0xff]
    %v641 = vld [vmem:[#allocation5 + $0x90] sm:$0xff]
    %v642 = vld [vmem:[#allocation5 + $0x98] sm:$0xff]
    %v643 = vld [vmem:[#allocation5 + $0xa0] sm:$0xff]
    %v644 = vld [vmem:[#allocation5 + $0xa8] sm:$0xff]
    %v645 = vld [vmem:[#allocation5 + $0xb0] sm:$0xff]
    %v646 = vld [vmem:[#allocation5 + $0xb8] sm:$0xff]
    %v647 = vld [vmem:[#allocation5 + $0xc0] sm:$0xff]
    %v648 = vld [vmem:[#allocation5 + $0xc8] sm:$0xff]
    %v649 = vld [vmem:[#allocation5 + $0xd0] sm:$0xff]
    %v650 = vld [vmem:[#allocation5 + $0xd8] sm:$0xff]
    %v651 = vld [vmem:[#allocation5 + $0xe0] sm:$0xff]
    %v652 = vld [vmem:[#allocation5 + $0xe8] sm:$0xff]
    %v653 = vld [vmem:[#allocation5 + $0xf0] sm:$0xff]
    %v654 = vld [vmem:[#allocation5 + $0xf8] sm:$0xff]
    %v655 = vld [vmem:[#allocation5 + $0x100] sm:$0xff]
    %v656 = vld [vmem:[#allocation5 + $0x108] sm:$0xff]
    %v657 = vld [vmem:[#allocation5 + $0x110] sm:$0xff]
    %v658 = vld [vmem:[#allocation5 + $0x118] sm:$0xff]
    %v659 = vld [vmem:[#allocation5 + $0x120] sm:$0xff]
    %v660 = vld [vmem:[#allocation5 + $0x128] sm:$0xff]
    %v661 = vld [vmem:[#allocation5 + $0x130] sm:$0xff]
    %v662 = vld [vmem:[#allocation5 + $0x138] sm:$0xff]
    %v663 = vld [vmem:[#allocation5 + $0x140] sm:$0xff]
    %v664 = vld [vmem:[#allocation5 + $0x148] sm:$0xff]
    %v665 = vld [vmem:[#allocation5 + $0x150] sm:$0xff]
    %v666 = vld [vmem:[#allocation5 + $0x158] sm:$0xff]
    %v667 = vld [vmem:[#allocation5 + $0x160] sm:$0xff]
    %v668 = vld [vmem:[#allocation5 + $0x168] sm:$0xff]
    %v669 = vld [vmem:[#allocation5 + $0x170] sm:$0xff]
    %v670 = vld [vmem:[#allocation5 + $0x178] sm:$0xff]
    %v671 = vld [vmem:[#allocation5 + $0x180] sm:$0xff]
    %v672 = vld [vmem:[#allocation5 + $0x188] sm:$0xff]
    %v673 = vld [vmem:[#allocation5 + $0x190] sm:$0xff]
    %v674 = vld [vmem:[#allocation5 + $0x198] sm:$0xff]
    %v675 = vld [vmem:[#allocation5 + $0x1a0] sm:$0xff]
    %v676 = vld [vmem:[#allocation5 + $0x1a8] sm:$0xff]
    %v677 = vld [vmem:[#allocation5 + $0x1b0] sm:$0xff]
    %v678 = vld [vmem:[#allocation5 + $0x1b8] sm:$0xff]
    %v679 = vld [vmem:[#allocation5 + $0x1c0] sm:$0xff]
    %v680 = vld [vmem:[#allocation5 + $0x1c8] sm:$0xff]
    %v681 = vld [vmem:[#allocation5 + $0x1d0] sm:$0xff]
    %v682 = vld [vmem:[#allocation5 + $0x1d8] sm:$0xff]
    %v683 = vld [vmem:[#allocation5 + $0x1e0] sm:$0xff]
    %v684 = vld [vmem:[#allocation5 + $0x1e8] sm:$0xff]
    %v685 = vld [vmem:[#allocation5 + $0x1f0] sm:$0xff]
    %v686 = vld [vmem:[#allocation5 + $0x1f8] sm:$0xff]
    %v687 = vld [vmem:[%s5] sm:$0x3]
    %v689 = vlaneseq
    %v690 = vshrl.u32 %v689, 7
    %v691 = vsub.s32 0, %v690
    %v692 = vrot.slane %v687, %v691
    %v693 = vlaneseq
    %v694 = vshrl.u32 %v693, 7
    %v695 = vsub.s32 1, %v694
    %v696 = vrot.slane %v687, %v695
    %v763 = vunpack.c.l.b16 %v623
    %v764 = vunpack.c.h.b16 %v623
    %v765 = vunpack.c.l.b16 %v624
    %v766 = vunpack.c.h.b16 %v624
    %v767 = vunpack.c.l.b16 %v625
    %v768 = vunpack.c.h.b16 %v625
    %v769 = vunpack.c.l.b16 %v626
    %v770 = vunpack.c.h.b16 %v626
    %v771 = vunpack.c.l.b16 %v627
    %v772 = vunpack.c.h.b16 %v627
    %v773 = vunpack.c.l.b16 %v628
    %v774 = vunpack.c.h.b16 %v628
    %v775 = vunpack.c.l.b16 %v629
    %v776 = vunpack.c.h.b16 %v629
    %v777 = vunpack.c.l.b16 %v630
    %v778 = vunpack.c.h.b16 %v630
    %v779 = vunpack.c.l.b16 %v631
    %v780 = vunpack.c.h.b16 %v631
    %v781 = vunpack.c.l.b16 %v632
    %v782 = vunpack.c.h.b16 %v632
    %v783 = vunpack.c.l.b16 %v633
    %v784 = vunpack.c.h.b16 %v633
    %v785 = vunpack.c.l.b16 %v634
    %v786 = vunpack.c.h.b16 %v634
    %v787 = vunpack.c.l.b16 %v635
    %v788 = vunpack.c.h.b16 %v635
    %v789 = vunpack.c.l.b16 %v636
    %v790 = vunpack.c.h.b16 %v636
    %v791 = vunpack.c.l.b16 %v637
    %v792 = vunpack.c.h.b16 %v637
    %v793 = vunpack.c.l.b16 %v638
    %v794 = vunpack.c.h.b16 %v638
    %v795 = vunpack.c.l.b16 %v639
    %v796 = vunpack.c.h.b16 %v639
    %v797 = vunpack.c.l.b16 %v640
    %v798 = vunpack.c.h.b16 %v640
    %v799 = vunpack.c.l.b16 %v641
    %v800 = vunpack.c.h.b16 %v641
    %v801 = vunpack.c.l.b16 %v642
    %v802 = vunpack.c.h.b16 %v642
    %v803 = vunpack.c.l.b16 %v643
    %v804 = vunpack.c.h.b16 %v643
    %v805 = vunpack.c.l.b16 %v644
    %v806 = vunpack.c.h.b16 %v644
    %v807 = vunpack.c.l.b16 %v645
    %v808 = vunpack.c.h.b16 %v645
    %v809 = vunpack.c.l.b16 %v646
    %v810 = vunpack.c.h.b16 %v646
    %v811 = vunpack.c.l.b16 %v647
    %v812 = vunpack.c.h.b16 %v647
    %v813 = vunpack.c.l.b16 %v648
    %v814 = vunpack.c.h.b16 %v648
    %v815 = vunpack.c.l.b16 %v649
    %v816 = vunpack.c.h.b16 %v649
    %v817 = vunpack.c.l.b16 %v650
    %v818 = vunpack.c.h.b16 %v650
    %v819 = vunpack.c.l.b16 %v651
    %v820 = vunpack.c.h.b16 %v651
    %v821 = vunpack.c.l.b16 %v652
    %v822 = vunpack.c.h.b16 %v652
    %v823 = vunpack.c.l.b16 %v653
    %v824 = vunpack.c.h.b16 %v653
    %v825 = vunpack.c.l.b16 %v654
    %v826 = vunpack.c.h.b16 %v654
    %v827 = vunpack.c.l.b16 %v655
    %v828 = vunpack.c.h.b16 %v655
    %v829 = vunpack.c.l.b16 %v656
    %v830 = vunpack.c.h.b16 %v656
    %v831 = vunpack.c.l.b16 %v657
    %v832 = vunpack.c.h.b16 %v657
    %v833 = vunpack.c.l.b16 %v658
    %v834 = vunpack.c.h.b16 %v658
    %v835 = vunpack.c.l.b16 %v659
    %v836 = vunpack.c.h.b16 %v659
    %v837 = vunpack.c.l.b16 %v660
    %v838 = vunpack.c.h.b16 %v660
    %v839 = vunpack.c.l.b16 %v661
    %v840 = vunpack.c.h.b16 %v661
    %v841 = vunpack.c.l.b16 %v662
    %v842 = vunpack.c.h.b16 %v662
    %v843 = vunpack.c.l.b16 %v663
    %v844 = vunpack.c.h.b16 %v663
    %v845 = vunpack.c.l.b16 %v664
    %v846 = vunpack.c.h.b16 %v664
    %v847 = vunpack.c.l.b16 %v665
    %v848 = vunpack.c.h.b16 %v665
    %v849 = vunpack.c.l.b16 %v666
    %v850 = vunpack.c.h.b16 %v666
    %v851 = vunpack.c.l.b16 %v667
    %v852 = vunpack.c.h.b16 %v667
    %v853 = vunpack.c.l.b16 %v668
    %v854 = vunpack.c.h.b16 %v668
    %v855 = vunpack.c.l.b16 %v669
    %v856 = vunpack.c.h.b16 %v669
    %v857 = vunpack.c.l.b16 %v670
    %v858 = vunpack.c.h.b16 %v670
    %v859 = vunpack.c.l.b16 %v671
    %v860 = vunpack.c.h.b16 %v671
    %v861 = vunpack.c.l.b16 %v672
    %v862 = vunpack.c.h.b16 %v672
    %v863 = vunpack.c.l.b16 %v673
    %v864 = vunpack.c.h.b16 %v673
    %v865 = vunpack.c.l.b16 %v674
    %v866 = vunpack.c.h.b16 %v674
    %v867 = vunpack.c.l.b16 %v675
    %v868 = vunpack.c.h.b16 %v675
    %v869 = vunpack.c.l.b16 %v676
    %v870 = vunpack.c.h.b16 %v676
    %v871 = vunpack.c.l.b16 %v677
    %v872 = vunpack.c.h.b16 %v677
    %v873 = vunpack.c.l.b16 %v678
    %v874 = vunpack.c.h.b16 %v678
    %v875 = vunpack.c.l.b16 %v679
    %v876 = vunpack.c.h.b16 %v679
    %v877 = vunpack.c.l.b16 %v680
    %v878 = vunpack.c.h.b16 %v680
    %v879 = vunpack.c.l.b16 %v681
    %v880 = vunpack.c.h.b16 %v681
    %v881 = vunpack.c.l.b16 %v682
    %v882 = vunpack.c.h.b16 %v682
    %v883 = vunpack.c.l.b16 %v683
    %v884 = vunpack.c.h.b16 %v683
    %v885 = vunpack.c.l.b16 %v684
    %v886 = vunpack.c.h.b16 %v684
    %v887 = vunpack.c.l.b16 %v685
    %v888 = vunpack.c.h.b16 %v685
    %v889 = vunpack.c.l.b16 %v686
    %v890 = vunpack.c.h.b16 %v686
    %v891 = vpack.c.b16 %v765, %v763
    %v892 = vpack.c.b16 %v766, %v764
    %v893 = vpack.c.b16 %v769, %v767
    %v894 = vpack.c.b16 %v770, %v768
    %v895 = vpack.c.b16 %v773, %v771
    %v896 = vpack.c.b16 %v774, %v772
    %v897 = vpack.c.b16 %v777, %v775
    %v898 = vpack.c.b16 %v778, %v776
    %v899 = vpack.c.b16 %v781, %v779
    %v900 = vpack.c.b16 %v782, %v780
    %v901 = vpack.c.b16 %v785, %v783
    %v902 = vpack.c.b16 %v786, %v784
    %v903 = vpack.c.b16 %v789, %v787
    %v904 = vpack.c.b16 %v790, %v788
    %v905 = vpack.c.b16 %v793, %v791
    %v906 = vpack.c.b16 %v794, %v792
    %v907 = vpack.c.b16 %v797, %v795
    %v908 = vpack.c.b16 %v798, %v796
    %v909 = vpack.c.b16 %v801, %v799
    %v910 = vpack.c.b16 %v802, %v800
    %v911 = vpack.c.b16 %v805, %v803
    %v912 = vpack.c.b16 %v806, %v804
    %v913 = vpack.c.b16 %v809, %v807
    %v914 = vpack.c.b16 %v810, %v808
    %v915 = vpack.c.b16 %v813, %v811
    %v916 = vpack.c.b16 %v814, %v812
    %v917 = vpack.c.b16 %v817, %v815
    %v918 = vpack.c.b16 %v818, %v816
    %v919 = vpack.c.b16 %v821, %v819
    %v920 = vpack.c.b16 %v822, %v820
    %v921 = vpack.c.b16 %v825, %v823
    %v922 = vpack.c.b16 %v826, %v824
    %v923 = vpack.c.b16 %v829, %v827
    %v924 = vpack.c.b16 %v830, %v828
    %v925 = vpack.c.b16 %v833, %v831
    %v926 = vpack.c.b16 %v834, %v832
    %v927 = vpack.c.b16 %v837, %v835
    %v928 = vpack.c.b16 %v838, %v836
    %v929 = vpack.c.b16 %v841, %v839
    %v930 = vpack.c.b16 %v842, %v840
    %v931 = vpack.c.b16 %v845, %v843
    %v932 = vpack.c.b16 %v846, %v844
    %v933 = vpack.c.b16 %v849, %v847
    %v934 = vpack.c.b16 %v850, %v848
    %v935 = vpack.c.b16 %v853, %v851
    %v936 = vpack.c.b16 %v854, %v852
    %v937 = vpack.c.b16 %v857, %v855
    %v938 = vpack.c.b16 %v858, %v856
    %v939 = vpack.c.b16 %v861, %v859
    %v940 = vpack.c.b16 %v862, %v860
    %v941 = vpack.c.b16 %v865, %v863
    %v942 = vpack.c.b16 %v866, %v864
    %v943 = vpack.c.b16 %v869, %v867
    %v944 = vpack.c.b16 %v870, %v868
    %v945 = vpack.c.b16 %v873, %v871
    %v946 = vpack.c.b16 %v874, %v872
    %v947 = vpack.c.b16 %v877, %v875
    %v948 = vpack.c.b16 %v878, %v876
    %v949 = vpack.c.b16 %v881, %v879
    %v950 = vpack.c.b16 %v882, %v880
    %v951 = vpack.c.b16 %v885, %v883
    %v952 = vpack.c.b16 %v886, %v884
    %v953 = vpack.c.b16 %v889, %v887
    %v954 = vpack.c.b16 %v890, %v888
    %1019 = vmatprep.subr.bf16.mxu0 %v906
    %1020 = vmatpush1.bf16.msra.mxu0 %v905
    %1021 = vmatprep.subr.bf16.mxu0 %v904
    %1022 = vmatpush1.bf16.msra.mxu0 %v903
    %1023 = vmatprep.subr.bf16.mxu0 %v902
    %1024 = vmatpush1.bf16.msra.mxu0 %v901
    %1025 = vmatprep.subr.bf16.mxu0 %v900
    %1026 = vmatpush1.bf16.msra.mxu0 %v899
    %1027 = vmatprep.subr.bf16.mxu0 %v898
    %1028 = vmatpush1.bf16.msra.mxu0 %v897
    %1029 = vmatprep.subr.bf16.mxu0 %v896
    %1030 = vmatpush1.bf16.msra.mxu0 %v895
    %1031 = vmatprep.subr.bf16.mxu0 %v894
    %1032 = vmatpush1.bf16.msra.mxu0 %v893
    %1033 = vmatprep.subr.bf16.mxu0 %v892
    %1034 = vmatpush1.bf16.msra.mxu0 %v891
    %1035 = vmatprep.subr.bf16.mxu0 %v922
    %1036 = vmatpush2.bf16.msra.mxu0 %v921
    %1037 = vmatprep.subr.bf16.mxu0 %v920
    %1038 = vmatpush2.bf16.msra.mxu0 %v919
    %1039 = vmatprep.subr.bf16.mxu0 %v918
    %1040 = vmatpush2.bf16.msra.mxu0 %v917
    %1041 = vmatprep.subr.bf16.mxu0 %v916
    %1042 = vmatpush2.bf16.msra.mxu0 %v915
    %1043 = vmatprep.subr.bf16.mxu0 %v914
    %1044 = vmatpush2.bf16.msra.mxu0 %v913
    %1045 = vmatprep.subr.bf16.mxu0 %v912
    %1046 = vmatpush2.bf16.msra.mxu0 %v911
    %1047 = vmatprep.subr.bf16.mxu0 %v910
    %1048 = vmatpush2.bf16.msra.mxu0 %v909
    %1049 = vmatprep.subr.bf16.mxu0 %v908
    %1050 = vmatpush2.bf16.msra.mxu0 %v907
    %1051 = vmatprep.mubr.bf16.mxu0 %v620
    %1052 = vmatmul.mubr.bf16.gmra.mxu0 %v619
    %v1053 = vpop.f32.mrf.mxu0
    %v1054 = vadd.f32 %v692, %v1053
    %v1055 = vpop.f32.mrf.mxu0
    %v1056 = vadd.f32 %v696, %v1055
    %v1057 = vpop.f32.mrf.mxu0
    %v1058 = vpop.f32.mrf.mxu0
    %1059 = vdwg.mxu0
    %1060 = vmatprep.subr.bf16.mxu0 %v938
    %1061 = vmatpush1.bf16.msra.mxu0 %v937
    %1062 = vmatprep.subr.bf16.mxu0 %v936
    %1063 = vmatpush1.bf16.msra.mxu0 %v935
    %1064 = vmatprep.subr.bf16.mxu0 %v934
    %1065 = vmatpush1.bf16.msra.mxu0 %v933
    %1066 = vmatprep.subr.bf16.mxu0 %v932
    %1067 = vmatpush1.bf16.msra.mxu0 %v931
    %1068 = vmatprep.subr.bf16.mxu0 %v930
    %1069 = vmatpush1.bf16.msra.mxu0 %v929
    %1070 = vmatprep.subr.bf16.mxu0 %v928
    %1071 = vmatpush1.bf16.msra.mxu0 %v927
    %1072 = vmatprep.subr.bf16.mxu0 %v926
    %1073 = vmatpush1.bf16.msra.mxu0 %v925
    %1074 = vmatprep.subr.bf16.mxu0 %v924
    %1075 = vmatpush1.bf16.msra.mxu0 %v923
    %1076 = vmatprep.subr.bf16.mxu0 %v954
    %1077 = vmatpush2.bf16.msra.mxu0 %v953
    %1078 = vmatprep.subr.bf16.mxu0 %v952
    %1079 = vmatpush2.bf16.msra.mxu0 %v951
    %1080 = vmatprep.subr.bf16.mxu0 %v950
    %1081 = vmatpush2.bf16.msra.mxu0 %v949
    %1082 = vmatprep.subr.bf16.mxu0 %v948
    %1083 = vmatpush2.bf16.msra.mxu0 %v947
    %1084 = vmatprep.subr.bf16.mxu0 %v946
    %1085 = vmatpush2.bf16.msra.mxu0 %v945
    %1086 = vmatprep.subr.bf16.mxu0 %v944
    %1087 = vmatpush2.bf16.msra.mxu0 %v943
    %1088 = vmatprep.subr.bf16.mxu0 %v942
    %1089 = vmatpush2.bf16.msra.mxu0 %v941
    %1090 = vmatprep.subr.bf16.mxu0 %v940
    %1091 = vmatpush2.bf16.msra.mxu0 %v939
    %1092 = vmatprep.mubr.bf16.mxu0 %v622
    %1093 = vmatmul.mubr.bf16.gmra.mxu0 %v621
    %v1094 = vpop.f32.mrf.mxu0
    %v1095 = vadd.f32 %v1054, %v1094
    %v1096 = vpop.f32.mrf.mxu0
    %v1097 = vadd.f32 %v1056, %v1096
    %v1098 = vpop.f32.mrf.mxu0
    %v1099 = vpop.f32.mrf.mxu0
    %1100 = vdwg.mxu0
    %v1101 = vmax.f32 %v1095, 0.0
    %v1102 = vmax.f32 %v1097, 0.0
    %v1103 = vpack.c.bf16 %v1101, %v1101
    %v1104 = vpack.c.bf16 %v1102, %v1102
    %v1105 = vld [vmem:[#allocation7] sm:$0xf]
    %v1106 = vld [vmem:[#allocation7 + $0x4] sm:$0xf]
    %v1107 = vld [vmem:[#allocation7 + $0x8] sm:$0xf]
    %v1108 = vld [vmem:[#allocation7 + $0xc] sm:$0xf]
    %v1109 = vld [vmem:[#allocation7 + $0x10] sm:$0xf]
    %v1110 = vld [vmem:[#allocation7 + $0x14] sm:$0xf]
    %v1111 = vld [vmem:[#allocation7 + $0x18] sm:$0xf]
    %v1112 = vld [vmem:[#allocation7 + $0x1c] sm:$0xf]
    %v1113 = vld [vmem:[#allocation7 + $0x20] sm:$0xf]
    %v1114 = vld [vmem:[#allocation7 + $0x24] sm:$0xf]
    %v1115 = vld [vmem:[#allocation7 + $0x28] sm:$0xf]
    %v1116 = vld [vmem:[#allocation7 + $0x2c] sm:$0xf]
    %v1117 = vld [vmem:[#allocation7 + $0x30] sm:$0xf]
    %v1118 = vld [vmem:[#allocation7 + $0x34] sm:$0xf]
    %v1119 = vld [vmem:[#allocation7 + $0x38] sm:$0xf]
    %v1120 = vld [vmem:[#allocation7 + $0x3c] sm:$0xf]
    %v1121 = vld [vmem:[#allocation7 + $0x40] sm:$0xf]
    %v1122 = vld [vmem:[#allocation7 + $0x44] sm:$0xf]
    %v1123 = vld [vmem:[#allocation7 + $0x48] sm:$0xf]
    %v1124 = vld [vmem:[#allocation7 + $0x4c] sm:$0xf]
    %v1125 = vld [vmem:[#allocation7 + $0x50] sm:$0xf]
    %v1126 = vld [vmem:[#allocation7 + $0x54] sm:$0xf]
    %v1127 = vld [vmem:[#allocation7 + $0x58] sm:$0xf]
    %v1128 = vld [vmem:[#allocation7 + $0x5c] sm:$0xf]
    %v1129 = vld [vmem:[#allocation7 + $0x60] sm:$0xf]
    %v1130 = vld [vmem:[#allocation7 + $0x64] sm:$0xf]
    %v1131 = vld [vmem:[#allocation7 + $0x68] sm:$0xf]
    %v1132 = vld [vmem:[#allocation7 + $0x6c] sm:$0xf]
    %v1133 = vld [vmem:[#allocation7 + $0x70] sm:$0xf]
    %v1134 = vld [vmem:[#allocation7 + $0x74] sm:$0xf]
    %v1135 = vld [vmem:[#allocation7 + $0x78] sm:$0xf]
    %v1136 = vld [vmem:[#allocation7 + $0x7c] sm:$0xf]
    %v1137 = vld [vmem:[%s7] sm:$0x1]
    %v1139 = vlaneseq
    %v1140 = vshrl.u32 %v1139, 7
    %v1141 = vsub.s32 0, %v1140
    %v1142 = vrot.slane %v1137, %v1141
    %v1176 = vunpack.c.l.b16 %v1105
    %v1177 = vunpack.c.l.b16 %v1106
    %v1178 = vunpack.c.l.b16 %v1107
    %v1179 = vunpack.c.l.b16 %v1108
    %v1180 = vunpack.c.l.b16 %v1109
    %v1181 = vunpack.c.l.b16 %v1110
    %v1182 = vunpack.c.l.b16 %v1111
    %v1183 = vunpack.c.l.b16 %v1112
    %v1184 = vunpack.c.l.b16 %v1113
    %v1185 = vunpack.c.l.b16 %v1114
    %v1186 = vunpack.c.l.b16 %v1115
    %v1187 = vunpack.c.l.b16 %v1116
    %v1188 = vunpack.c.l.b16 %v1117
    %v1189 = vunpack.c.l.b16 %v1118
    %v1190 = vunpack.c.l.b16 %v1119
    %v1191 = vunpack.c.l.b16 %v1120
    %v1192 = vunpack.c.l.b16 %v1121
    %v1193 = vunpack.c.l.b16 %v1122
    %v1194 = vunpack.c.l.b16 %v1123
    %v1195 = vunpack.c.l.b16 %v1124
    %v1196 = vunpack.c.l.b16 %v1125
    %v1197 = vunpack.c.l.b16 %v1126
    %v1198 = vunpack.c.l.b16 %v1127
    %v1199 = vunpack.c.l.b16 %v1128
    %v1200 = vunpack.c.l.b16 %v1129
    %v1201 = vunpack.c.l.b16 %v1130
    %v1202 = vunpack.c.l.b16 %v1131
    %v1203 = vunpack.c.l.b16 %v1132
    %v1204 = vunpack.c.l.b16 %v1133
    %v1205 = vunpack.c.l.b16 %v1134
    %v1206 = vunpack.c.l.b16 %v1135
    %v1207 = vunpack.c.l.b16 %v1136
    %v1208 = vpack.c.b16 %v1177, %v1176
    %v1209 = vpack.c.b16 %v1179, %v1178
    %v1210 = vpack.c.b16 %v1181, %v1180
    %v1211 = vpack.c.b16 %v1183, %v1182
    %v1212 = vpack.c.b16 %v1185, %v1184
    %v1213 = vpack.c.b16 %v1187, %v1186
    %v1214 = vpack.c.b16 %v1189, %v1188
    %v1215 = vpack.c.b16 %v1191, %v1190
    %v1216 = vpack.c.b16 %v1193, %v1192
    %v1217 = vpack.c.b16 %v1195, %v1194
    %v1218 = vpack.c.b16 %v1197, %v1196
    %v1219 = vpack.c.b16 %v1199, %v1198
    %v1220 = vpack.c.b16 %v1201, %v1200
    %v1221 = vpack.c.b16 %v1203, %v1202
    %v1222 = vpack.c.b16 %v1205, %v1204
    %v1223 = vpack.c.b16 %v1207, %v1206
    %1240 = vmatprep.subr.bf16.mxu0 0
    %1241 = vmatpush1.bf16.msra.mxu0 %v1215
    %1242 = vmatprep.subr.bf16.mxu0 0
    %1243 = vmatpush1.bf16.msra.mxu0 %v1214
    %1244 = vmatprep.subr.bf16.mxu0 0
    %1245 = vmatpush1.bf16.msra.mxu0 %v1213
    %1246 = vmatprep.subr.bf16.mxu0 0
    %1247 = vmatpush1.bf16.msra.mxu0 %v1212
    %1248 = vmatprep.subr.bf16.mxu0 0
    %1249 = vmatpush1.bf16.msra.mxu0 %v1211
    %1250 = vmatprep.subr.bf16.mxu0 0
    %1251 = vmatpush1.bf16.msra.mxu0 %v1210
    %1252 = vmatprep.subr.bf16.mxu0 0
    %1253 = vmatpush1.bf16.msra.mxu0 %v1209
    %1254 = vmatprep.subr.bf16.mxu0 0
    %1255 = vmatpush1.bf16.msra.mxu0 %v1208
    %1256 = vmatprep.subr.bf16.mxu0 0
    %1257 = vmatpush2.bf16.msra.mxu0 %v1223
    %1258 = vmatprep.subr.bf16.mxu0 0
    %1259 = vmatpush2.bf16.msra.mxu0 %v1222
    %1260 = vmatprep.subr.bf16.mxu0 0
    %1261 = vmatpush2.bf16.msra.mxu0 %v1221
    %1262 = vmatprep.subr.bf16.mxu0 0
    %1263 = vmatpush2.bf16.msra.mxu0 %v1220
    %1264 = vmatprep.subr.bf16.mxu0 0
    %1265 = vmatpush2.bf16.msra.mxu0 %v1219
    %1266 = vmatprep.subr.bf16.mxu0 0
    %1267 = vmatpush2.bf16.msra.mxu0 %v1218
    %1268 = vmatprep.subr.bf16.mxu0 0
    %1269 = vmatpush2.bf16.msra.mxu0 %v1217
    %1270 = vmatprep.subr.bf16.mxu0 0
    %1271 = vmatpush2.bf16.msra.mxu0 %v1216
    %1272 = vmatprep.mubr.bf16.mxu0 %v1104
    %1273 = vmatmul.mubr.bf16.gmra.mxu0 %v1103
    %v1274 = vpop.f32.mrf.mxu0
    %v1275 = vadd.f32 %v1142, %v1274
    %v1276 = vpop.f32.mrf.mxu0
    %v1277 = vpop.f32.mrf.mxu0
    %v1278 = vpop.f32.mrf.mxu0
    %1279 = vdwg.mxu0
    %v1280 = vmax.f32 %v1275, 0.0
    %v1281 = vpack.c.bf16 %v1280, %v1280
    %v1282 = vld [vmem:[#allocation8] sm:$0xff]
    %v1283 = vld [vmem:[#allocation8 + $0x8] sm:$0xff]
    %v1284 = vld [vmem:[#allocation8 + $0x10] sm:$0xff]
    %v1285 = vld [vmem:[#allocation8 + $0x18] sm:$0xff]
    %v1286 = vld [vmem:[#allocation8 + $0x20] sm:$0xff]
    %v1287 = vld [vmem:[#allocation8 + $0x28] sm:$0xff]
    %v1288 = vld [vmem:[#allocation8 + $0x30] sm:$0xff]
    %v1289 = vld [vmem:[#allocation8 + $0x38] sm:$0xff]
    %v1290 = vld [vmem:[#allocation8 + $0x40] sm:$0xff]
    %v1291 = vld [vmem:[#allocation8 + $0x48] sm:$0xff]
    %v1292 = vld [vmem:[#allocation8 + $0x50] sm:$0xff]
    %v1293 = vld [vmem:[#allocation8 + $0x58] sm:$0xff]
    %v1294 = vld [vmem:[#allocation8 + $0x60] sm:$0xff]
    %v1295 = vld [vmem:[#allocation8 + $0x68] sm:$0xff]
    %v1296 = vld [vmem:[#allocation8 + $0x70] sm:$0xff]
    %v1297 = vld [vmem:[#allocation8 + $0x78] sm:$0xff]
    %v1298 = vld [vmem:[%s9] sm:$0x3]
    %v1300 = vlaneseq
    %v1301 = vshrl.u32 %v1300, 7
    %v1302 = vsub.s32 0, %v1301
    %v1303 = vrot.slane %v1298, %v1302
    %v1304 = vlaneseq
    %v1305 = vshrl.u32 %v1304, 7
    %v1306 = vsub.s32 1, %v1305
    %v1307 = vrot.slane %v1298, %v1306
    %v1326 = vunpack.c.l.b16 %v1282
    %v1327 = vunpack.c.h.b16 %v1282
    %v1328 = vunpack.c.l.b16 %v1283
    %v1329 = vunpack.c.h.b16 %v1283
    %v1330 = vunpack.c.l.b16 %v1284
    %v1331 = vunpack.c.h.b16 %v1284
    %v1332 = vunpack.c.l.b16 %v1285
    %v1333 = vunpack.c.h.b16 %v1285
    %v1334 = vunpack.c.l.b16 %v1286
    %v1335 = vunpack.c.h.b16 %v1286
    %v1336 = vunpack.c.l.b16 %v1287
    %v1337 = vunpack.c.h.b16 %v1287
    %v1338 = vunpack.c.l.b16 %v1288
    %v1339 = vunpack.c.h.b16 %v1288
    %v1340 = vunpack.c.l.b16 %v1289
    %v1341 = vunpack.c.h.b16 %v1289
    %v1342 = vunpack.c.l.b16 %v1290
    %v1343 = vunpack.c.h.b16 %v1290
    %v1344 = vunpack.c.l.b16 %v1291
    %v1345 = vunpack.c.h.b16 %v1291
    %v1346 = vunpack.c.l.b16 %v1292
    %v1347 = vunpack.c.h.b16 %v1292
    %v1348 = vunpack.c.l.b16 %v1293
    %v1349 = vunpack.c.h.b16 %v1293
    %v1350 = vunpack.c.l.b16 %v1294
    %v1351 = vunpack.c.h.b16 %v1294
    %v1352 = vunpack.c.l.b16 %v1295
    %v1353 = vunpack.c.h.b16 %v1295
    %v1354 = vunpack.c.l.b16 %v1296
    %v1355 = vunpack.c.h.b16 %v1296
    %v1356 = vunpack.c.l.b16 %v1297
    %v1357 = vunpack.c.h.b16 %v1297
    %v1358 = vpack.c.b16 %v1328, %v1326
    %v1359 = vpack.c.b16 %v1329, %v1327
    %v1360 = vpack.c.b16 %v1332, %v1330
    %v1361 = vpack.c.b16 %v1333, %v1331
    %v1362 = vpack.c.b16 %v1336, %v1334
    %v1363 = vpack.c.b16 %v1337, %v1335
    %v1364 = vpack.c.b16 %v1340, %v1338
    %v1365 = vpack.c.b16 %v1341, %v1339
    %v1366 = vpack.c.b16 %v1344, %v1342
    %v1367 = vpack.c.b16 %v1345, %v1343
    %v1368 = vpack.c.b16 %v1348, %v1346
    %v1369 = vpack.c.b16 %v1349, %v1347
    %v1370 = vpack.c.b16 %v1352, %v1350
    %v1371 = vpack.c.b16 %v1353, %v1351
    %v1372 = vpack.c.b16 %v1356, %v1354
    %v1373 = vpack.c.b16 %v1357, %v1355
    %1390 = vmatprep.subr.bf16.mxu0 %v1373
    %1391 = vmatpush1.bf16.msra.mxu0 %v1372
    %1392 = vmatprep.subr.bf16.mxu0 %v1371
    %1393 = vmatpush1.bf16.msra.mxu0 %v1370
    %1394 = vmatprep.subr.bf16.mxu0 %v1369
    %1395 = vmatpush1.bf16.msra.mxu0 %v1368
    %1396 = vmatprep.subr.bf16.mxu0 %v1367
    %1397 = vmatpush1.bf16.msra.mxu0 %v1366
    %1398 = vmatprep.subr.bf16.mxu0 %v1365
    %1399 = vmatpush1.bf16.msra.mxu0 %v1364
    %1400 = vmatprep.subr.bf16.mxu0 %v1363
    %1401 = vmatpush1.bf16.msra.mxu0 %v1362
    %1402 = vmatprep.subr.bf16.mxu0 %v1361
    %1403 = vmatpush1.bf16.msra.mxu0 %v1360
    %1404 = vmatprep.subr.bf16.mxu0 %v1359
    %1405 = vmatpush1.bf16.msra.mxu0 %v1358
    %1406 = vmatprep.subr.bf16.mxu0 0
    %1407 = vmatpush2.bf16.msra.mxu0 0
    %1408 = vmatprep.subr.bf16.mxu0 0
    %1409 = vmatpush2.bf16.msra.mxu0 0
    %1410 = vmatprep.subr.bf16.mxu0 0
    %1411 = vmatpush2.bf16.msra.mxu0 0
    %1412 = vmatprep.subr.bf16.mxu0 0
    %1413 = vmatpush2.bf16.msra.mxu0 0
    %1414 = vmatprep.subr.bf16.mxu0 0
    %1415 = vmatpush2.bf16.msra.mxu0 0
    %1416 = vmatprep.subr.bf16.mxu0 0
    %1417 = vmatpush2.bf16.msra.mxu0 0
    %1418 = vmatprep.subr.bf16.mxu0 0
    %1419 = vmatpush2.bf16.msra.mxu0 0
    %1420 = vmatprep.subr.bf16.mxu0 0
    %1421 = vmatpush2.bf16.msra.mxu0 0
    %1422 = vmatprep.mubr.bf16.mxu0 0
    %1423 = vmatmul.mubr.bf16.gmra.mxu0 %v1281
    %v1424 = vpop.f32.mrf.mxu0
    %v1425 = vadd.f32 %v1303, %v1424
    %v1426 = vpop.f32.mrf.mxu0
    %v1427 = vadd.f32 %v1307, %v1426
    %v1428 = vpop.f32.mrf.mxu0
    %v1429 = vpop.f32.mrf.mxu0
    %1430 = vdwg.mxu0
    %v1431 = vmax.f32 %v1425, 0.0
    %v1432 = vmax.f32 %v1427, 0.0
    %v1433 = vpack.c.bf16 %v1431, %v1431
    %v1434 = vpack.c.bf16 %v1432, %v1432
    %v1435 = vld [vmem:[#allocation10] sm:$0xf]
    %v1436 = vld [vmem:[#allocation10 + $0x4] sm:$0xf]
    %v1437 = vld [vmem:[#allocation10 + $0x8] sm:$0xf]
    %v1438 = vld [vmem:[#allocation10 + $0xc] sm:$0xf]
    %v1439 = vld [vmem:[#allocation10 + $0x10] sm:$0xf]
    %v1440 = vld [vmem:[#allocation10 + $0x14] sm:$0xf]
    %v1441 = vld [vmem:[#allocation10 + $0x18] sm:$0xf]
    %v1442 = vld [vmem:[#allocation10 + $0x1c] sm:$0xf]
    %v1443 = vld [vmem:[#allocation10 + $0x20] sm:$0xf]
    %v1444 = vld [vmem:[#allocation10 + $0x24] sm:$0xf]
    %v1445 = vld [vmem:[#allocation10 + $0x28] sm:$0xf]
    %v1446 = vld [vmem:[#allocation10 + $0x2c] sm:$0xf]
    %v1447 = vld [vmem:[#allocation10 + $0x30] sm:$0xf]
    %v1448 = vld [vmem:[#allocation10 + $0x34] sm:$0xf]
    %v1449 = vld [vmem:[#allocation10 + $0x38] sm:$0xf]
    %v1450 = vld [vmem:[#allocation10 + $0x3c] sm:$0xf]
    %v1451 = vld [vmem:[#allocation10 + $0x40] sm:$0xf]
    %v1452 = vld [vmem:[#allocation10 + $0x44] sm:$0xf]
    %v1453 = vld [vmem:[#allocation10 + $0x48] sm:$0xf]
    %v1454 = vld [vmem:[#allocation10 + $0x4c] sm:$0xf]
    %v1455 = vld [vmem:[#allocation10 + $0x50] sm:$0xf]
    %v1456 = vld [vmem:[#allocation10 + $0x54] sm:$0xf]
    %v1457 = vld [vmem:[#allocation10 + $0x58] sm:$0xf]
    %v1458 = vld [vmem:[#allocation10 + $0x5c] sm:$0xf]
    %v1459 = vld [vmem:[#allocation10 + $0x60] sm:$0xf]
    %v1460 = vld [vmem:[#allocation10 + $0x64] sm:$0xf]
    %v1461 = vld [vmem:[#allocation10 + $0x68] sm:$0xf]
    %v1462 = vld [vmem:[#allocation10 + $0x6c] sm:$0xf]
    %v1463 = vld [vmem:[#allocation10 + $0x70] sm:$0xf]
    %v1464 = vld [vmem:[#allocation10 + $0x74] sm:$0xf]
    %v1465 = vld [vmem:[#allocation10 + $0x78] sm:$0xf]
    %v1466 = vld [vmem:[#allocation10 + $0x7c] sm:$0xf]
    %v1467 = vld [vmem:[%s11] sm:$0x1]
    %v1469 = vlaneseq
    %v1470 = vshrl.u32 %v1469, 7
    %v1471 = vsub.s32 0, %v1470
    %v1472 = vrot.slane %v1467, %v1471
    %v1506 = vunpack.c.l.b16 %v1435
    %v1507 = vunpack.c.l.b16 %v1436
    %v1508 = vunpack.c.l.b16 %v1437
    %v1509 = vunpack.c.l.b16 %v1438
    %v1510 = vunpack.c.l.b16 %v1439
    %v1511 = vunpack.c.l.b16 %v1440
    %v1512 = vunpack.c.l.b16 %v1441
    %v1513 = vunpack.c.l.b16 %v1442
    %v1514 = vunpack.c.l.b16 %v1443
    %v1515 = vunpack.c.l.b16 %v1444
    %v1516 = vunpack.c.l.b16 %v1445
    %v1517 = vunpack.c.l.b16 %v1446
    %v1518 = vunpack.c.l.b16 %v1447
    %v1519 = vunpack.c.l.b16 %v1448
    %v1520 = vunpack.c.l.b16 %v1449
    %v1521 = vunpack.c.l.b16 %v1450
    %v1522 = vunpack.c.l.b16 %v1451
    %v1523 = vunpack.c.l.b16 %v1452
    %v1524 = vunpack.c.l.b16 %v1453
    %v1525 = vunpack.c.l.b16 %v1454
    %v1526 = vunpack.c.l.b16 %v1455
    %v1527 = vunpack.c.l.b16 %v1456
    %v1528 = vunpack.c.l.b16 %v1457
    %v1529 = vunpack.c.l.b16 %v1458
    %v1530 = vunpack.c.l.b16 %v1459
    %v1531 = vunpack.c.l.b16 %v1460
    %v1532 = vunpack.c.l.b16 %v1461
    %v1533 = vunpack.c.l.b16 %v1462
    %v1534 = vunpack.c.l.b16 %v1463
    %v1535 = vunpack.c.l.b16 %v1464
    %v1536 = vunpack.c.l.b16 %v1465
    %v1537 = vunpack.c.l.b16 %v1466
    %v1538 = vpack.c.b16 %v1507, %v1506
    %v1539 = vpack.c.b16 %v1509, %v1508
    %v1540 = vpack.c.b16 %v1511, %v1510
    %v1541 = vpack.c.b16 %v1513, %v1512
    %v1542 = vpack.c.b16 %v1515, %v1514
    %v1543 = vpack.c.b16 %v1517, %v1516
    %v1544 = vpack.c.b16 %v1519, %v1518
    %v1545 = vpack.c.b16 %v1521, %v1520
    %v1546 = vpack.c.b16 %v1523, %v1522
    %v1547 = vpack.c.b16 %v1525, %v1524
    %v1548 = vpack.c.b16 %v1527, %v1526
    %v1549 = vpack.c.b16 %v1529, %v1528
    %v1550 = vpack.c.b16 %v1531, %v1530
    %v1551 = vpack.c.b16 %v1533, %v1532
    %v1552 = vpack.c.b16 %v1535, %v1534
    %v1553 = vpack.c.b16 %v1537, %v1536
    %1570 = vmatprep.subr.bf16.mxu0 0
    %1571 = vmatpush1.bf16.msra.mxu0 %v1545
    %1572 = vmatprep.subr.bf16.mxu0 0
    %1573 = vmatpush1.bf16.msra.mxu0 %v1544
    %1574 = vmatprep.subr.bf16.mxu0 0
    %1575 = vmatpush1.bf16.msra.mxu0 %v1543
    %1576 = vmatprep.subr.bf16.mxu0 0
    %1577 = vmatpush1.bf16.msra.mxu0 %v1542
    %1578 = vmatprep.subr.bf16.mxu0 0
    %1579 = vmatpush1.bf16.msra.mxu0 %v1541
    %1580 = vmatprep.subr.bf16.mxu0 0
    %1581 = vmatpush1.bf16.msra.mxu0 %v1540
    %1582 = vmatprep.subr.bf16.mxu0 0
    %1583 = vmatpush1.bf16.msra.mxu0 %v1539
    %1584 = vmatprep.subr.bf16.mxu0 0
    %1585 = vmatpush1.bf16.msra.mxu0 %v1538
    %1586 = vmatprep.subr.bf16.mxu0 0
    %1587 = vmatpush2.bf16.msra.mxu0 %v1553
    %1588 = vmatprep.subr.bf16.mxu0 0
    %1589 = vmatpush2.bf16.msra.mxu0 %v1552
    %1590 = vmatprep.subr.bf16.mxu0 0
    %1591 = vmatpush2.bf16.msra.mxu0 %v1551
    %1592 = vmatprep.subr.bf16.mxu0 0
    %1593 = vmatpush2.bf16.msra.mxu0 %v1550
    %1594 = vmatprep.subr.bf16.mxu0 0
    %1595 = vmatpush2.bf16.msra.mxu0 %v1549
    %1596 = vmatprep.subr.bf16.mxu0 0
    %1597 = vmatpush2.bf16.msra.mxu0 %v1548
    %1598 = vmatprep.subr.bf16.mxu0 0
    %1599 = vmatpush2.bf16.msra.mxu0 %v1547
    %1600 = vmatprep.subr.bf16.mxu0 0
    %1601 = vmatpush2.bf16.msra.mxu0 %v1546
    %1602 = vmatprep.mubr.bf16.mxu0 %v1434
    %1603 = vmatmul.mubr.bf16.gmra.mxu0 %v1433
    %v1604 = vpop.f32.mrf.mxu0
    %v1605 = vadd.f32 %v1472, %v1604
    %v1606 = vpop.f32.mrf.mxu0
    %v1607 = vpop.f32.mrf.mxu0
    %v1608 = vpop.f32.mrf.mxu0
    %1609 = vdwg.mxu0
    %v1610 = vtanh.pop %v1605
    %1611 = vst [vmem:[%s12] sm:$0xff] %v1610
    // Predicated region
    $region70: #{generator_forward.1} parent=1 // pred_check
      _
    $region71: #{generator_forward.1} parent=1 // pred_check_branch
      %1613 = sbr.rel (0) target = $region73
    $region72: #{generator_forward.1} parent=1 // pred_region
      _
    $region73: #{generator_forward.1} parent=1 // pred_fallthru
      _
    // Predicated region
    $region74: #{generator_forward.1} parent=1 // pred_check
      _
    $region75: #{generator_forward.1} parent=1 // pred_check_branch
      %1615 = sbr.rel (0) target = $region77
    $region76: #{generator_forward.1} parent=1 // pred_region
      _
    $region77: #{generator_forward.1} parent=1 // pred_fallthru
      _
    %1616 = vsyncpa [#allocation4], 1
    %1617 = vsyncpa [#allocation6], 1
    %1618 = vsyncpa [#allocation9], 1

</llo_original>
